<compile_context>
chip_gen: v7x
topology: tpu7x:2x2x1
jax: 0.10.0
libtpu: 0.0.40
codegen_flags: <defaults>
</compile_context>

<pallas_src>
import jax
import jax.numpy as jnp
from jax.experimental import pallas as pl
from jax.experimental.pallas import tpu as pltpu


def _lstm_mlp_kernel(x_ref, w_ih_ref, w_hh_ref, b_ref,
                     w1_ref, b1_ref, w2_ref, b2_ref, w3_ref, b3_ref,
                     out_ref):
    """Single invocation: full LSTM recurrence + MLP head."""
    TB, _ = x_ref.shape                 # x is time-major flattened: (T*B, I)
    B = out_ref.shape[0]
    T = TB // B
    H = w_hh_ref.shape[0]               # w_hh_ref is (H, 4H)

    # ---- Hoisted input projection: one MXU pass over all time steps.
    xw = jnp.dot(x_ref[...], w_ih_ref[...],
                 preferred_element_type=jnp.float32)
    xw = xw + b_ref[...]                # (T*B, 4H); bias added once

    w_hh = w_hh_ref[...]                # (H, 4H), loaded once

    h = jnp.zeros((B, H), jnp.float32)
    c = jnp.zeros((B, H), jnp.float32)

    # ---- Recurrence: T is small & static -> fully unrolled.  Only the
    # (B,H)@(H,4H) dot depends on h, so it alone is serialized.
    for t in range(T):
        gates = xw[t * B:(t + 1) * B, :] + jnp.dot(
            h, w_hh, preferred_element_type=jnp.float32)      # (B, 4H)
        i_g = jax.nn.sigmoid(gates[:, 0 * H:1 * H])
        f_g = jax.nn.sigmoid(gates[:, 1 * H:2 * H])
        g_g = jnp.tanh(gates[:, 2 * H:3 * H])
        o_g = jax.nn.sigmoid(gates[:, 3 * H:4 * H])
        c = f_g * c + i_g * g_g
        h = o_g * jnp.tanh(c)

    # ---- MLP head on the last hidden state.
    y = jnp.dot(h, w1_ref[...], preferred_element_type=jnp.float32) + b1_ref[...]
    y = jnp.maximum(y, 0.0)
    y = jnp.dot(y, w2_ref[...], preferred_element_type=jnp.float32) + b2_ref[...]
    y = jnp.maximum(y, 0.0)
    y = jnp.dot(y, w3_ref[...], preferred_element_type=jnp.float32) + b3_ref[...]
    out_ref[...] = y.astype(out_ref.dtype)


@jax.jit
def lstm_model_forward(x, params):
    """x: (B, T, I) batch_first float32.  Returns (B, 1)."""
    B, T, I = x.shape
    H = params["w_hh"].shape[1]          # PyTorch w_hh is (4H, H)

    # Time-major flatten so each step is a contiguous (B, 4H) slab in-kernel.
    x_tm = jnp.transpose(x, (1, 0, 2)).reshape(T * B, I)

    full = lambda shape: pl.BlockSpec(shape, lambda i, s=shape: (0,) * len(s))

    out = pl.pallas_call(
        _lstm_mlp_kernel,
        out_shape=jax.ShapeDtypeStruct((B, 1), jnp.float32),
        grid=(1,),                                  # single step, all in VMEM
        in_specs=[
            full((T * B, I)),                       # x (time-major, flattened)
            full((I, 4 * H)),                       # W_ih^T
            full((H, 4 * H)),                       # W_hh^T
            full((1, 4 * H)),                       # b_ih + b_hh
            full((H, 32)), full((1, 32)),           # fc1
            full((32, 32)), full((1, 32)),          # fc2
            full((32, 1)), full((1, 1)),            # fc3
        ],
        out_specs=full((B, 1)),
        compiler_params=pltpu.CompilerParams(
            dimension_semantics=("arbitrary",)),
    )(x_tm,
      params["w_ih"].T, params["w_hh"].T,
      (params["b_ih"] + params["b_hh"]).reshape(1, -1),
      params["w1"].T, params["b1"].reshape(1, -1),
      params["w2"].T, params["b2"].reshape(1, -1),
      params["w3"].T, params["b3"].reshape(1, -1))
    return out


def init_params(key, input_size, hidden_size):
    """Deterministic synthetic params in PyTorch weight layouts."""
    ks = jax.random.split(key, 10)
    u = lambda k, shape, s: jax.random.uniform(k, shape, jnp.float32, -s, s)
    sl = 1.0 / jnp.sqrt(hidden_size)
    return {
        # nn.LSTM: weight_ih_l0 (4H, I), weight_hh_l0 (4H, H), biases (4H,)
        "w_ih": u(ks[0], (4 * hidden_size, input_size), sl),
        "w_hh": u(ks[1], (4 * hidden_size, hidden_size), sl),
        "b_ih": u(ks[2], (4 * hidden_size,), sl),
        "b_hh": u(ks[3], (4 * hidden_size,), sl),
        # nn.Linear: weight (out, in), bias (out,)
        "w1": u(ks[4], (32, hidden_size), 1.0 / jnp.sqrt(hidden_size)),
        "b1": u(ks[5], (32,), 1.0 / jnp.sqrt(hidden_size)),
        "w2": u(ks[6], (32, 32), 1.0 / jnp.sqrt(32.0)),
        "b2": u(ks[7], (32,), 1.0 / jnp.sqrt(32.0)),
        "w3": u(ks[8], (1, 32), 1.0 / jnp.sqrt(32.0)),
        "b3": u(ks[9], (1,), 1.0 / jnp.sqrt(32.0)),
    }


def reference_forward(x, p):
    """Pure-JAX reference mirroring the PyTorch module."""
    B, T, I = x.shape
    H = p["w_hh"].shape[1]

    def step(carry, x_t):
        h, c = carry
        gates = x_t @ p["w_ih"].T + h @ p["w_hh"].T + p["b_ih"] + p["b_hh"]
        i_g, f_g, g_g, o_g = jnp.split(gates, 4, axis=-1)
        i_g, f_g, o_g = jax.nn.sigmoid(i_g), jax.nn.sigmoid(f_g), jax.nn.sigmoid(o_g)
        g_g = jnp.tanh(g_g)
        c = f_g * c + i_g * g_g
        h = o_g * jnp.tanh(c)
        return (h, c), h

    h0 = jnp.zeros((B, H), jnp.float32)
    (h_last, _), _ = jax.lax.scan(step, (h0, h0), jnp.transpose(x, (1, 0, 2)))
    y = jnp.maximum(h_last @ p["w1"].T + p["b1"], 0.0)
    y = jnp.maximum(y @ p["w2"].T + p["b2"], 0.0)
    return y @ p["w3"].T + p["b3"]


if __name__ == "__main__":
    batch, seq, input_size, hidden_size = 8, 8, 16, 32

    key = jax.random.PRNGKey(0)
    kx, kp = jax.random.split(key)
    x = jax.random.normal(kx, (batch, seq, input_size), jnp.float32)
    params = init_params(kp, input_size, hidden_size)

    out = lstm_model_forward(x, params)
    out = jax.block_until_ready(out)

    ref = reference_forward(x, params)
    assert out.shape == (batch, 1), out.shape
    assert jnp.allclose(out, ref, atol=1e-4, rtol=1e-4), (
        f"max abs err {jnp.max(jnp.abs(out - ref))}")

    print("KERNEL_OK")
</pallas_src>

<mosaic_0001>
module attributes {stable_mosaic.version = 11 : i64} {
  func.func @_lstm_mlp_kernel(%arg0: i32, %arg1: memref<64x16xf32, #tpu.memory_space<vmem>>, %arg2: memref<16x128xf32, #tpu.memory_space<vmem>>, %arg3: memref<32x128xf32, #tpu.memory_space<vmem>>, %arg4: memref<1x128xf32, #tpu.memory_space<vmem>>, %arg5: memref<32x32xf32, #tpu.memory_space<vmem>>, %arg6: memref<1x32xf32, #tpu.memory_space<vmem>>, %arg7: memref<32x32xf32, #tpu.memory_space<vmem>>, %arg8: memref<1x32xf32, #tpu.memory_space<vmem>>, %arg9: memref<32x1xf32, #tpu.memory_space<vmem>>, %arg10: memref<1x1xf32, #tpu.memory_space<vmem>>, %arg11: memref<8x1xf32, #tpu.memory_space<vmem>>) attributes {dimension_semantics = [#tpu.dimension_semantics<arbitrary>], iteration_bounds = array<i64: 1>, scalar_prefetch = 0 : i64, scratch_operands = 0 : i64, tpu.core_type = #tpu.core_type<tc>, window_params = [{pipeline_mode = #tpu.pipeline_mode<synchronous>, transform_indices = @transform_0, window_bounds = array<i64: 64, 16>}, {pipeline_mode = #tpu.pipeline_mode<synchronous>, transform_indices = @transform_1, window_bounds = array<i64: 16, 128>}, {pipeline_mode = #tpu.pipeline_mode<synchronous>, transform_indices = @transform_2, window_bounds = array<i64: 32, 128>}, {pipeline_mode = #tpu.pipeline_mode<synchronous>, transform_indices = @transform_3, window_bounds = array<i64: 1, 128>}, {pipeline_mode = #tpu.pipeline_mode<synchronous>, transform_indices = @transform_4, window_bounds = array<i64: 32, 32>}, {pipeline_mode = #tpu.pipeline_mode<synchronous>, transform_indices = @transform_5, window_bounds = array<i64: 1, 32>}, {pipeline_mode = #tpu.pipeline_mode<synchronous>, transform_indices = @transform_6, window_bounds = array<i64: 32, 32>}, {pipeline_mode = #tpu.pipeline_mode<synchronous>, transform_indices = @transform_7, window_bounds = array<i64: 1, 32>}, {pipeline_mode = #tpu.pipeline_mode<synchronous>, transform_indices = @transform_8, window_bounds = array<i64: 32, 1>}, {pipeline_mode = #tpu.pipeline_mode<synchronous>, transform_indices = @transform_9, window_bounds = array<i64: 1, 1>}, {pipeline_mode = #tpu.pipeline_mode<synchronous>, transform_indices = @transform_10, window_bounds = array<i64: 8, 1>}]} {
    %c0 = arith.constant 0 : index
    %c0_0 = arith.constant 0 : index
    %0 = vector.load %arg1[%c0, %c0_0] : memref<64x16xf32, #tpu.memory_space<vmem>>, vector<64x16xf32>
    %c0_1 = arith.constant 0 : index
    %c0_2 = arith.constant 0 : index
    %1 = vector.load %arg2[%c0_1, %c0_2] : memref<16x128xf32, #tpu.memory_space<vmem>>, vector<16x128xf32>
    %cst = arith.constant dense<0.000000e+00> : vector<64x128xf32>
    %2 = tpu.matmul %0, %1, %cst {dimension_numbers = #tpu.dot_dimension_numbers<[1], [0], [0], [1], [0, 0, 1, 1], [], []>} : vector<64x16xf32>, vector<16x128xf32>, vector<64x128xf32> -> vector<64x128xf32>
    %c0_3 = arith.constant 0 : index
    %c0_4 = arith.constant 0 : index
    %3 = vector.load %arg4[%c0_3, %c0_4] : memref<1x128xf32, #tpu.memory_space<vmem>>, vector<1x128xf32>
    %4 = vector.broadcast %3 : vector<1x128xf32> to vector<64x128xf32>
    %5 = arith.addf %2, %4 : vector<64x128xf32>
    %c0_5 = arith.constant 0 : index
    %c0_6 = arith.constant 0 : index
    %6 = vector.load %arg3[%c0_5, %c0_6] : memref<32x128xf32, #tpu.memory_space<vmem>>, vector<32x128xf32>
    %cst_7 = arith.constant 0.000000e+00 : f32
    %7 = vector.broadcast %cst_7 : f32 to vector<8x32xf32>
    %cst_8 = arith.constant 0.000000e+00 : f32
    %8 = vector.broadcast %cst_8 : f32 to vector<8x32xf32>
    %9 = vector.extract_strided_slice %5 {offsets = [0, 0], sizes = [8, 128], strides = [1, 1]} : vector<64x128xf32> to vector<8x128xf32>
    %cst_9 = arith.constant dense<0.000000e+00> : vector<8x128xf32>
    %10 = tpu.matmul %7, %6, %cst_9 {dimension_numbers = #tpu.dot_dimension_numbers<[1], [0], [0], [1], [0, 0, 1, 1], [], []>} : vector<8x32xf32>, vector<32x128xf32>, vector<8x128xf32> -> vector<8x128xf32>
    %11 = arith.addf %9, %10 : vector<8x128xf32>
    %12 = vector.extract_strided_slice %11 {offsets = [0, 0], sizes = [8, 32], strides = [1, 1]} : vector<8x128xf32> to vector<8x32xf32>
    %13 = arith.negf %12 : vector<8x32xf32>
    %14 = math.exp %13 : vector<8x32xf32>
    %cst_10 = arith.constant 1.000000e+00 : f32
    %15 = vector.broadcast %cst_10 : f32 to vector<8x32xf32>
    %16 = arith.addf %15, %14 : vector<8x32xf32>
    %17 = arith.divf %15, %16 : vector<8x32xf32>
    %18 = vector.extract_strided_slice %11 {offsets = [0, 32], sizes = [8, 32], strides = [1, 1]} : vector<8x128xf32> to vector<8x32xf32>
    %19 = arith.negf %18 : vector<8x32xf32>
    %20 = math.exp %19 : vector<8x32xf32>
    %cst_11 = arith.constant 1.000000e+00 : f32
    %21 = vector.broadcast %cst_11 : f32 to vector<8x32xf32>
    %22 = arith.addf %21, %20 : vector<8x32xf32>
    %23 = arith.divf %21, %22 : vector<8x32xf32>
    %24 = vector.extract_strided_slice %11 {offsets = [0, 64], sizes = [8, 32], strides = [1, 1]} : vector<8x128xf32> to vector<8x32xf32>
    %25 = math.tanh %24 : vector<8x32xf32>
    %26 = vector.extract_strided_slice %11 {offsets = [0, 96], sizes = [8, 32], strides = [1, 1]} : vector<8x128xf32> to vector<8x32xf32>
    %27 = arith.negf %26 : vector<8x32xf32>
    %28 = math.exp %27 : vector<8x32xf32>
    %cst_12 = arith.constant 1.000000e+00 : f32
    %29 = vector.broadcast %cst_12 : f32 to vector<8x32xf32>
    %30 = arith.addf %29, %28 : vector<8x32xf32>
    %31 = arith.divf %29, %30 : vector<8x32xf32>
    %32 = arith.mulf %23, %8 : vector<8x32xf32>
    %33 = arith.mulf %17, %25 : vector<8x32xf32>
    %34 = arith.addf %32, %33 : vector<8x32xf32>
    %35 = math.tanh %34 : vector<8x32xf32>
    %36 = arith.mulf %31, %35 : vector<8x32xf32>
    %37 = vector.extract_strided_slice %5 {offsets = [8, 0], sizes = [8, 128], strides = [1, 1]} : vector<64x128xf32> to vector<8x128xf32>
    %cst_13 = arith.constant dense<0.000000e+00> : vector<8x128xf32>
    %38 = tpu.matmul %36, %6, %cst_13 {dimension_numbers = #tpu.dot_dimension_numbers<[1], [0], [0], [1], [0, 0, 1, 1], [], []>} : vector<8x32xf32>, vector<32x128xf32>, vector<8x128xf32> -> vector<8x128xf32>
    %39 = arith.addf %37, %38 : vector<8x128xf32>
    %40 = vector.extract_strided_slice %39 {offsets = [0, 0], sizes = [8, 32], strides = [1, 1]} : vector<8x128xf32> to vector<8x32xf32>
    %41 = arith.negf %40 : vector<8x32xf32>
    %42 = math.exp %41 : vector<8x32xf32>
    %cst_14 = arith.constant 1.000000e+00 : f32
    %43 = vector.broadcast %cst_14 : f32 to vector<8x32xf32>
    %44 = arith.addf %43, %42 : vector<8x32xf32>
    %45 = arith.divf %43, %44 : vector<8x32xf32>
    %46 = vector.extract_strided_slice %39 {offsets = [0, 32], sizes = [8, 32], strides = [1, 1]} : vector<8x128xf32> to vector<8x32xf32>
    %47 = arith.negf %46 : vector<8x32xf32>
    %48 = math.exp %47 : vector<8x32xf32>
    %cst_15 = arith.constant 1.000000e+00 : f32
    %49 = vector.broadcast %cst_15 : f32 to vector<8x32xf32>
    %50 = arith.addf %49, %48 : vector<8x32xf32>
    %51 = arith.divf %49, %50 : vector<8x32xf32>
    %52 = vector.extract_strided_slice %39 {offsets = [0, 64], sizes = [8, 32], strides = [1, 1]} : vector<8x128xf32> to vector<8x32xf32>
    %53 = math.tanh %52 : vector<8x32xf32>
    %54 = vector.extract_strided_slice %39 {offsets = [0, 96], sizes = [8, 32], strides = [1, 1]} : vector<8x128xf32> to vector<8x32xf32>
    %55 = arith.negf %54 : vector<8x32xf32>
    %56 = math.exp %55 : vector<8x32xf32>
    %cst_16 = arith.constant 1.000000e+00 : f32
    %57 = vector.broadcast %cst_16 : f32 to vector<8x32xf32>
    %58 = arith.addf %57, %56 : vector<8x32xf32>
    %59 = arith.divf %57, %58 : vector<8x32xf32>
    %60 = arith.mulf %51, %34 : vector<8x32xf32>
    %61 = arith.mulf %45, %53 : vector<8x32xf32>
    %62 = arith.addf %60, %61 : vector<8x32xf32>
    %63 = math.tanh %62 : vector<8x32xf32>
    %64 = arith.mulf %59, %63 : vector<8x32xf32>
    %65 = vector.extract_strided_slice %5 {offsets = [16, 0], sizes = [8, 128], strides = [1, 1]} : vector<64x128xf32> to vector<8x128xf32>
    %cst_17 = arith.constant dense<0.000000e+00> : vector<8x128xf32>
    %66 = tpu.matmul %64, %6, %cst_17 {dimension_numbers = #tpu.dot_dimension_numbers<[1], [0], [0], [1], [0, 0, 1, 1], [], []>} : vector<8x32xf32>, vector<32x128xf32>, vector<8x128xf32> -> vector<8x128xf32>
    %67 = arith.addf %65, %66 : vector<8x128xf32>
    %68 = vector.extract_strided_slice %67 {offsets = [0, 0], sizes = [8, 32], strides = [1, 1]} : vector<8x128xf32> to vector<8x32xf32>
    %69 = arith.negf %68 : vector<8x32xf32>
    %70 = math.exp %69 : vector<8x32xf32>
    %cst_18 = arith.constant 1.000000e+00 : f32
    %71 = vector.broadcast %cst_18 : f32 to vector<8x32xf32>
    %72 = arith.addf %71, %70 : vector<8x32xf32>
    %73 = arith.divf %71, %72 : vector<8x32xf32>
    %74 = vector.extract_strided_slice %67 {offsets = [0, 32], sizes = [8, 32], strides = [1, 1]} : vector<8x128xf32> to vector<8x32xf32>
    %75 = arith.negf %74 : vector<8x32xf32>
    %76 = math.exp %75 : vector<8x32xf32>
    %cst_19 = arith.constant 1.000000e+00 : f32
    %77 = vector.broadcast %cst_19 : f32 to vector<8x32xf32>
    %78 = arith.addf %77, %76 : vector<8x32xf32>
    %79 = arith.divf %77, %78 : vector<8x32xf32>
    %80 = vector.extract_strided_slice %67 {offsets = [0, 64], sizes = [8, 32], strides = [1, 1]} : vector<8x128xf32> to vector<8x32xf32>
    %81 = math.tanh %80 : vector<8x32xf32>
    %82 = vector.extract_strided_slice %67 {offsets = [0, 96], sizes = [8, 32], strides = [1, 1]} : vector<8x128xf32> to vector<8x32xf32>
    %83 = arith.negf %82 : vector<8x32xf32>
    %84 = math.exp %83 : vector<8x32xf32>
    %cst_20 = arith.constant 1.000000e+00 : f32
    %85 = vector.broadcast %cst_20 : f32 to vector<8x32xf32>
    %86 = arith.addf %85, %84 : vector<8x32xf32>
    %87 = arith.divf %85, %86 : vector<8x32xf32>
    %88 = arith.mulf %79, %62 : vector<8x32xf32>
    %89 = arith.mulf %73, %81 : vector<8x32xf32>
    %90 = arith.addf %88, %89 : vector<8x32xf32>
    %91 = math.tanh %90 : vector<8x32xf32>
    %92 = arith.mulf %87, %91 : vector<8x32xf32>
    %93 = vector.extract_strided_slice %5 {offsets = [24, 0], sizes = [8, 128], strides = [1, 1]} : vector<64x128xf32> to vector<8x128xf32>
    %cst_21 = arith.constant dense<0.000000e+00> : vector<8x128xf32>
    %94 = tpu.matmul %92, %6, %cst_21 {dimension_numbers = #tpu.dot_dimension_numbers<[1], [0], [0], [1], [0, 0, 1, 1], [], []>} : vector<8x32xf32>, vector<32x128xf32>, vector<8x128xf32> -> vector<8x128xf32>
    %95 = arith.addf %93, %94 : vector<8x128xf32>
    %96 = vector.extract_strided_slice %95 {offsets = [0, 0], sizes = [8, 32], strides = [1, 1]} : vector<8x128xf32> to vector<8x32xf32>
    %97 = arith.negf %96 : vector<8x32xf32>
    %98 = math.exp %97 : vector<8x32xf32>
    %cst_22 = arith.constant 1.000000e+00 : f32
    %99 = vector.broadcast %cst_22 : f32 to vector<8x32xf32>
    %100 = arith.addf %99, %98 : vector<8x32xf32>
    %101 = arith.divf %99, %100 : vector<8x32xf32>
    %102 = vector.extract_strided_slice %95 {offsets = [0, 32], sizes = [8, 32], strides = [1, 1]} : vector<8x128xf32> to vector<8x32xf32>
    %103 = arith.negf %102 : vector<8x32xf32>
    %104 = math.exp %103 : vector<8x32xf32>
    %cst_23 = arith.constant 1.000000e+00 : f32
    %105 = vector.broadcast %cst_23 : f32 to vector<8x32xf32>
    %106 = arith.addf %105, %104 : vector<8x32xf32>
    %107 = arith.divf %105, %106 : vector<8x32xf32>
    %108 = vector.extract_strided_slice %95 {offsets = [0, 64], sizes = [8, 32], strides = [1, 1]} : vector<8x128xf32> to vector<8x32xf32>
    %109 = math.tanh %108 : vector<8x32xf32>
    %110 = vector.extract_strided_slice %95 {offsets = [0, 96], sizes = [8, 32], strides = [1, 1]} : vector<8x128xf32> to vector<8x32xf32>
    %111 = arith.negf %110 : vector<8x32xf32>
    %112 = math.exp %111 : vector<8x32xf32>
    %cst_24 = arith.constant 1.000000e+00 : f32
    %113 = vector.broadcast %cst_24 : f32 to vector<8x32xf32>
    %114 = arith.addf %113, %112 : vector<8x32xf32>
    %115 = arith.divf %113, %114 : vector<8x32xf32>
    %116 = arith.mulf %107, %90 : vector<8x32xf32>
    %117 = arith.mulf %101, %109 : vector<8x32xf32>
    %118 = arith.addf %116, %117 : vector<8x32xf32>
    %119 = math.tanh %118 : vector<8x32xf32>
    %120 = arith.mulf %115, %119 : vector<8x32xf32>
    %121 = vector.extract_strided_slice %5 {offsets = [32, 0], sizes = [8, 128], strides = [1, 1]} : vector<64x128xf32> to vector<8x128xf32>
    %cst_25 = arith.constant dense<0.000000e+00> : vector<8x128xf32>
    %122 = tpu.matmul %120, %6, %cst_25 {dimension_numbers = #tpu.dot_dimension_numbers<[1], [0], [0], [1], [0, 0, 1, 1], [], []>} : vector<8x32xf32>, vector<32x128xf32>, vector<8x128xf32> -> vector<8x128xf32>
    %123 = arith.addf %121, %122 : vector<8x128xf32>
    %124 = vector.extract_strided_slice %123 {offsets = [0, 0], sizes = [8, 32], strides = [1, 1]} : vector<8x128xf32> to vector<8x32xf32>
    %125 = arith.negf %124 : vector<8x32xf32>
    %126 = math.exp %125 : vector<8x32xf32>
    %cst_26 = arith.constant 1.000000e+00 : f32
    %127 = vector.broadcast %cst_26 : f32 to vector<8x32xf32>
    %128 = arith.addf %127, %126 : vector<8x32xf32>
    %129 = arith.divf %127, %128 : vector<8x32xf32>
    %130 = vector.extract_strided_slice %123 {offsets = [0, 32], sizes = [8, 32], strides = [1, 1]} : vector<8x128xf32> to vector<8x32xf32>
    %131 = arith.negf %130 : vector<8x32xf32>
    %132 = math.exp %131 : vector<8x32xf32>
    %cst_27 = arith.constant 1.000000e+00 : f32
    %133 = vector.broadcast %cst_27 : f32 to vector<8x32xf32>
    %134 = arith.addf %133, %132 : vector<8x32xf32>
    %135 = arith.divf %133, %134 : vector<8x32xf32>
    %136 = vector.extract_strided_slice %123 {offsets = [0, 64], sizes = [8, 32], strides = [1, 1]} : vector<8x128xf32> to vector<8x32xf32>
    %137 = math.tanh %136 : vector<8x32xf32>
    %138 = vector.extract_strided_slice %123 {offsets = [0, 96], sizes = [8, 32], strides = [1, 1]} : vector<8x128xf32> to vector<8x32xf32>
    %139 = arith.negf %138 : vector<8x32xf32>
    %140 = math.exp %139 : vector<8x32xf32>
    %cst_28 = arith.constant 1.000000e+00 : f32
    %141 = vector.broadcast %cst_28 : f32 to vector<8x32xf32>
    %142 = arith.addf %141, %140 : vector<8x32xf32>
    %143 = arith.divf %141, %142 : vector<8x32xf32>
    %144 = arith.mulf %135, %118 : vector<8x32xf32>
    %145 = arith.mulf %129, %137 : vector<8x32xf32>
    %146 = arith.addf %144, %145 : vector<8x32xf32>
    %147 = math.tanh %146 : vector<8x32xf32>
    %148 = arith.mulf %143, %147 : vector<8x32xf32>
    %149 = vector.extract_strided_slice %5 {offsets = [40, 0], sizes = [8, 128], strides = [1, 1]} : vector<64x128xf32> to vector<8x128xf32>
    %cst_29 = arith.constant dense<0.000000e+00> : vector<8x128xf32>
    %150 = tpu.matmul %148, %6, %cst_29 {dimension_numbers = #tpu.dot_dimension_numbers<[1], [0], [0], [1], [0, 0, 1, 1], [], []>} : vector<8x32xf32>, vector<32x128xf32>, vector<8x128xf32> -> vector<8x128xf32>
    %151 = arith.addf %149, %150 : vector<8x128xf32>
    %152 = vector.extract_strided_slice %151 {offsets = [0, 0], sizes = [8, 32], strides = [1, 1]} : vector<8x128xf32> to vector<8x32xf32>
    %153 = arith.negf %152 : vector<8x32xf32>
    %154 = math.exp %153 : vector<8x32xf32>
    %cst_30 = arith.constant 1.000000e+00 : f32
    %155 = vector.broadcast %cst_30 : f32 to vector<8x32xf32>
    %156 = arith.addf %155, %154 : vector<8x32xf32>
    %157 = arith.divf %155, %156 : vector<8x32xf32>
    %158 = vector.extract_strided_slice %151 {offsets = [0, 32], sizes = [8, 32], strides = [1, 1]} : vector<8x128xf32> to vector<8x32xf32>
    %159 = arith.negf %158 : vector<8x32xf32>
    %160 = math.exp %159 : vector<8x32xf32>
    %cst_31 = arith.constant 1.000000e+00 : f32
    %161 = vector.broadcast %cst_31 : f32 to vector<8x32xf32>
    %162 = arith.addf %161, %160 : vector<8x32xf32>
    %163 = arith.divf %161, %162 : vector<8x32xf32>
    %164 = vector.extract_strided_slice %151 {offsets = [0, 64], sizes = [8, 32], strides = [1, 1]} : vector<8x128xf32> to vector<8x32xf32>
    %165 = math.tanh %164 : vector<8x32xf32>
    %166 = vector.extract_strided_slice %151 {offsets = [0, 96], sizes = [8, 32], strides = [1, 1]} : vector<8x128xf32> to vector<8x32xf32>
    %167 = arith.negf %166 : vector<8x32xf32>
    %168 = math.exp %167 : vector<8x32xf32>
    %cst_32 = arith.constant 1.000000e+00 : f32
    %169 = vector.broadcast %cst_32 : f32 to vector<8x32xf32>
    %170 = arith.addf %169, %168 : vector<8x32xf32>
    %171 = arith.divf %169, %170 : vector<8x32xf32>
    %172 = arith.mulf %163, %146 : vector<8x32xf32>
    %173 = arith.mulf %157, %165 : vector<8x32xf32>
    %174 = arith.addf %172, %173 : vector<8x32xf32>
    %175 = math.tanh %174 : vector<8x32xf32>
    %176 = arith.mulf %171, %175 : vector<8x32xf32>
    %177 = vector.extract_strided_slice %5 {offsets = [48, 0], sizes = [8, 128], strides = [1, 1]} : vector<64x128xf32> to vector<8x128xf32>
    %cst_33 = arith.constant dense<0.000000e+00> : vector<8x128xf32>
    %178 = tpu.matmul %176, %6, %cst_33 {dimension_numbers = #tpu.dot_dimension_numbers<[1], [0], [0], [1], [0, 0, 1, 1], [], []>} : vector<8x32xf32>, vector<32x128xf32>, vector<8x128xf32> -> vector<8x128xf32>
    %179 = arith.addf %177, %178 : vector<8x128xf32>
    %180 = vector.extract_strided_slice %179 {offsets = [0, 0], sizes = [8, 32], strides = [1, 1]} : vector<8x128xf32> to vector<8x32xf32>
    %181 = arith.negf %180 : vector<8x32xf32>
    %182 = math.exp %181 : vector<8x32xf32>
    %cst_34 = arith.constant 1.000000e+00 : f32
    %183 = vector.broadcast %cst_34 : f32 to vector<8x32xf32>
    %184 = arith.addf %183, %182 : vector<8x32xf32>
    %185 = arith.divf %183, %184 : vector<8x32xf32>
    %186 = vector.extract_strided_slice %179 {offsets = [0, 32], sizes = [8, 32], strides = [1, 1]} : vector<8x128xf32> to vector<8x32xf32>
    %187 = arith.negf %186 : vector<8x32xf32>
    %188 = math.exp %187 : vector<8x32xf32>
    %cst_35 = arith.constant 1.000000e+00 : f32
    %189 = vector.broadcast %cst_35 : f32 to vector<8x32xf32>
    %190 = arith.addf %189, %188 : vector<8x32xf32>
    %191 = arith.divf %189, %190 : vector<8x32xf32>
    %192 = vector.extract_strided_slice %179 {offsets = [0, 64], sizes = [8, 32], strides = [1, 1]} : vector<8x128xf32> to vector<8x32xf32>
    %193 = math.tanh %192 : vector<8x32xf32>
    %194 = vector.extract_strided_slice %179 {offsets = [0, 96], sizes = [8, 32], strides = [1, 1]} : vector<8x128xf32> to vector<8x32xf32>
    %195 = arith.negf %194 : vector<8x32xf32>
    %196 = math.exp %195 : vector<8x32xf32>
    %cst_36 = arith.constant 1.000000e+00 : f32
    %197 = vector.broadcast %cst_36 : f32 to vector<8x32xf32>
    %198 = arith.addf %197, %196 : vector<8x32xf32>
    %199 = arith.divf %197, %198 : vector<8x32xf32>
    %200 = arith.mulf %191, %174 : vector<8x32xf32>
    %201 = arith.mulf %185, %193 : vector<8x32xf32>
    %202 = arith.addf %200, %201 : vector<8x32xf32>
    %203 = math.tanh %202 : vector<8x32xf32>
    %204 = arith.mulf %199, %203 : vector<8x32xf32>
    %205 = vector.extract_strided_slice %5 {offsets = [56, 0], sizes = [8, 128], strides = [1, 1]} : vector<64x128xf32> to vector<8x128xf32>
    %cst_37 = arith.constant dense<0.000000e+00> : vector<8x128xf32>
    %206 = tpu.matmul %204, %6, %cst_37 {dimension_numbers = #tpu.dot_dimension_numbers<[1], [0], [0], [1], [0, 0, 1, 1], [], []>} : vector<8x32xf32>, vector<32x128xf32>, vector<8x128xf32> -> vector<8x128xf32>
    %207 = arith.addf %205, %206 : vector<8x128xf32>
    %208 = vector.extract_strided_slice %207 {offsets = [0, 0], sizes = [8, 32], strides = [1, 1]} : vector<8x128xf32> to vector<8x32xf32>
    %209 = arith.negf %208 : vector<8x32xf32>
    %210 = math.exp %209 : vector<8x32xf32>
    %cst_38 = arith.constant 1.000000e+00 : f32
    %211 = vector.broadcast %cst_38 : f32 to vector<8x32xf32>
    %212 = arith.addf %211, %210 : vector<8x32xf32>
    %213 = arith.divf %211, %212 : vector<8x32xf32>
    %214 = vector.extract_strided_slice %207 {offsets = [0, 32], sizes = [8, 32], strides = [1, 1]} : vector<8x128xf32> to vector<8x32xf32>
    %215 = arith.negf %214 : vector<8x32xf32>
    %216 = math.exp %215 : vector<8x32xf32>
    %cst_39 = arith.constant 1.000000e+00 : f32
    %217 = vector.broadcast %cst_39 : f32 to vector<8x32xf32>
    %218 = arith.addf %217, %216 : vector<8x32xf32>
    %219 = arith.divf %217, %218 : vector<8x32xf32>
    %220 = vector.extract_strided_slice %207 {offsets = [0, 64], sizes = [8, 32], strides = [1, 1]} : vector<8x128xf32> to vector<8x32xf32>
    %221 = math.tanh %220 : vector<8x32xf32>
    %222 = vector.extract_strided_slice %207 {offsets = [0, 96], sizes = [8, 32], strides = [1, 1]} : vector<8x128xf32> to vector<8x32xf32>
    %223 = arith.negf %222 : vector<8x32xf32>
    %224 = math.exp %223 : vector<8x32xf32>
    %cst_40 = arith.constant 1.000000e+00 : f32
    %225 = vector.broadcast %cst_40 : f32 to vector<8x32xf32>
    %226 = arith.addf %225, %224 : vector<8x32xf32>
    %227 = arith.divf %225, %226 : vector<8x32xf32>
    %228 = arith.mulf %219, %202 : vector<8x32xf32>
    %229 = arith.mulf %213, %221 : vector<8x32xf32>
    %230 = arith.addf %228, %229 : vector<8x32xf32>
    %231 = math.tanh %230 : vector<8x32xf32>
    %232 = arith.mulf %227, %231 : vector<8x32xf32>
    %c0_41 = arith.constant 0 : index
    %c0_42 = arith.constant 0 : index
    %233 = vector.load %arg5[%c0_41, %c0_42] : memref<32x32xf32, #tpu.memory_space<vmem>>, vector<32x32xf32>
    %cst_43 = arith.constant dense<0.000000e+00> : vector<8x32xf32>
    %234 = tpu.matmul %232, %233, %cst_43 {dimension_numbers = #tpu.dot_dimension_numbers<[1], [0], [0], [1], [0, 0, 1, 1], [], []>} : vector<8x32xf32>, vector<32x32xf32>, vector<8x32xf32> -> vector<8x32xf32>
    %c0_44 = arith.constant 0 : index
    %c0_45 = arith.constant 0 : index
    %235 = vector.load %arg6[%c0_44, %c0_45] : memref<1x32xf32, #tpu.memory_space<vmem>>, vector<1x32xf32>
    %236 = vector.broadcast %235 : vector<1x32xf32> to vector<8x32xf32>
    %237 = arith.addf %234, %236 : vector<8x32xf32>
    %cst_46 = arith.constant 0.000000e+00 : f32
    %238 = vector.broadcast %cst_46 : f32 to vector<8x32xf32>
    %239 = arith.maximumf %237, %238 : vector<8x32xf32>
    %c0_47 = arith.constant 0 : index
    %c0_48 = arith.constant 0 : index
    %240 = vector.load %arg7[%c0_47, %c0_48] : memref<32x32xf32, #tpu.memory_space<vmem>>, vector<32x32xf32>
    %cst_49 = arith.constant dense<0.000000e+00> : vector<8x32xf32>
    %241 = tpu.matmul %239, %240, %cst_49 {dimension_numbers = #tpu.dot_dimension_numbers<[1], [0], [0], [1], [0, 0, 1, 1], [], []>} : vector<8x32xf32>, vector<32x32xf32>, vector<8x32xf32> -> vector<8x32xf32>
    %c0_50 = arith.constant 0 : index
    %c0_51 = arith.constant 0 : index
    %242 = vector.load %arg8[%c0_50, %c0_51] : memref<1x32xf32, #tpu.memory_space<vmem>>, vector<1x32xf32>
    %243 = vector.broadcast %242 : vector<1x32xf32> to vector<8x32xf32>
    %244 = arith.addf %241, %243 : vector<8x32xf32>
    %cst_52 = arith.constant 0.000000e+00 : f32
    %245 = vector.broadcast %cst_52 : f32 to vector<8x32xf32>
    %246 = arith.maximumf %244, %245 : vector<8x32xf32>
    %c0_53 = arith.constant 0 : index
    %c0_54 = arith.constant 0 : index
    %247 = vector.load %arg9[%c0_53, %c0_54] : memref<32x1xf32, #tpu.memory_space<vmem>>, vector<32x1xf32>
    %cst_55 = arith.constant dense<0.000000e+00> : vector<8x1xf32>
    %248 = tpu.matmul %246, %247, %cst_55 {dimension_numbers = #tpu.dot_dimension_numbers<[1], [0], [0], [1], [0, 0, 1, 1], [], []>} : vector<8x32xf32>, vector<32x1xf32>, vector<8x1xf32> -> vector<8x1xf32>
    %c0_56 = arith.constant 0 : index
    %c0_57 = arith.constant 0 : index
    %249 = vector.load %arg10[%c0_56, %c0_57] : memref<1x1xf32, #tpu.memory_space<vmem>>, vector<1x1xf32>
    %250 = vector.broadcast %249 : vector<1x1xf32> to vector<8x1xf32>
    %251 = arith.addf %248, %250 : vector<8x1xf32>
    %c0_58 = arith.constant 0 : index
    %c0_59 = arith.constant 0 : index
    %252 = vector.load %arg11[%c0_58, %c0_59] : memref<8x1xf32, #tpu.memory_space<vmem>>, vector<8x1xf32>
    tpu.vector_store %arg11[%c0_58, %c0_59], %251 {strides = array<i32>} : memref<8x1xf32, #tpu.memory_space<vmem>>, vector<8x1xf32>,
    return
  }
  func.func @transform_0(%arg0: i32) -> (i32, i32) {
    %c0_i32 = arith.constant 0 : i32
    %c0_i32_0 = arith.constant 0 : i32
    %c0_i32_1 = arith.constant 0 : i32
    return %c0_i32, %c0_i32_0 : i32, i32
  }
  func.func @transform_1(%arg0: i32) -> (i32, i32) {
    %c0_i32 = arith.constant 0 : i32
    %c0_i32_0 = arith.constant 0 : i32
    %c0_i32_1 = arith.constant 0 : i32
    return %c0_i32, %c0_i32_0 : i32, i32
  }
  func.func @transform_2(%arg0: i32) -> (i32, i32) {
    %c0_i32 = arith.constant 0 : i32
    %c0_i32_0 = arith.constant 0 : i32
    %c0_i32_1 = arith.constant 0 : i32
    return %c0_i32, %c0_i32_0 : i32, i32
  }
  func.func @transform_3(%arg0: i32) -> (i32, i32) {
    %c0_i32 = arith.constant 0 : i32
    %c0_i32_0 = arith.constant 0 : i32
    %c0_i32_1 = arith.constant 0 : i32
    return %c0_i32, %c0_i32_0 : i32, i32
  }
  func.func @transform_4(%arg0: i32) -> (i32, i32) {
    %c0_i32 = arith.constant 0 : i32
    %c0_i32_0 = arith.constant 0 : i32
    %c0_i32_1 = arith.constant 0 : i32
    return %c0_i32, %c0_i32_0 : i32, i32
  }
  func.func @transform_5(%arg0: i32) -> (i32, i32) {
    %c0_i32 = arith.constant 0 : i32
    %c0_i32_0 = arith.constant 0 : i32
    %c0_i32_1 = arith.constant 0 : i32
    return %c0_i32, %c0_i32_0 : i32, i32
  }
  func.func @transform_6(%arg0: i32) -> (i32, i32) {
    %c0_i32 = arith.constant 0 : i32
    %c0_i32_0 = arith.constant 0 : i32
    %c0_i32_1 = arith.constant 0 : i32
    return %c0_i32, %c0_i32_0 : i32, i32
  }
  func.func @transform_7(%arg0: i32) -> (i32, i32) {
    %c0_i32 = arith.constant 0 : i32
    %c0_i32_0 = arith.constant 0 : i32
    %c0_i32_1 = arith.constant 0 : i32
    return %c0_i32, %c0_i32_0 : i32, i32
  }
  func.func @transform_8(%arg0: i32) -> (i32, i32) {
    %c0_i32 = arith.constant 0 : i32
    %c0_i32_0 = arith.constant 0 : i32
    %c0_i32_1 = arith.constant 0 : i32
    return %c0_i32, %c0_i32_0 : i32, i32
  }
  func.func @transform_9(%arg0: i32) -> (i32, i32) {
    %c0_i32 = arith.constant 0 : i32
    %c0_i32_0 = arith.constant 0 : i32
    %c0_i32_1 = arith.constant 0 : i32
    return %c0_i32, %c0_i32_0 : i32, i32
  }
  func.func @transform_10(%arg0: i32) -> (i32, i32) {
    %c0_i32 = arith.constant 0 : i32
    %c0_i32_0 = arith.constant 0 : i32
    %c0_i32_1 = arith.constant 0 : i32
    return %c0_i32, %c0_i32_0 : i32, i32
  }
}

</mosaic_0001>

<llo_original>
// kernel: lstm_model_forward.1
$region0: #{lstm_model_forward.1}
  #allocation0 [shape = 'u32[]', space=smem, size = 0x4, offset = 0x4, fixed_abs, tag = 'smem constant byte address 0x4 - core index']
  #allocation1 [shape = 'u32[144,128]{1,0:T(1,128)}', space=vmem, size = 0x12000, scoped, tag = 'internal scratch']
  #allocation2 [shape = 'f32[1,1]{1,0:T(1,128)S(1)}', space=vmem, size = 0x200, scoped, tag = 'scoped memory for lstm_model_forward.1']
  %s0 = inlined_call_operand.vmem [shape: f32[64,16], index: 0, kind: input, shape index: {}]
  %s1 = inlined_call_operand.vmem [shape: f32[16,128], index: 1, kind: input, shape index: {}]
  %s2 = inlined_call_operand.vmem [shape: f32[32,128], index: 2, kind: input, shape index: {}]
  %s3 = inlined_call_operand.vmem [shape: f32[1,128], index: 3, kind: input, shape index: {}]
  %s4 = inlined_call_operand.vmem [shape: f32[32,32], index: 4, kind: input, shape index: {}]
  %s5 = inlined_call_operand.vmem [shape: f32[1,32], index: 5, kind: input, shape index: {}]
  %s6 = inlined_call_operand.vmem [shape: f32[32,32], index: 6, kind: input, shape index: {}]
  %s7 = inlined_call_operand.vmem [shape: f32[1,32], index: 7, kind: input, shape index: {}]
  %s8 = inlined_call_operand.vmem [shape: f32[32,1], index: 8, kind: input, shape index: {}]
  %s9 = inlined_call_operand.<no memory space> [shape: f32[1,1], index: 9, kind: input, shape index: {}]
  %s10 = inlined_call_operand.vmem [shape: f32[8,1], index: 10, kind: output, shape index: {}]
  %s11 = sld [smem:[#allocation0]]
  $region50: #{lstm_model_forward.1} parent=0
    _
  %s13 = ssub.s32 1, %s11
  %s14 = scalar_select 0, %s13, %s11
  %v15 = vstv %s9
  %16 = vst [vmem:[#allocation2] sm:$0x1] %v15
  // Predicated region
  $region2: #{lstm_model_forward.1} parent=0 // pred_check
    _
  $region3: #{lstm_model_forward.1} parent=0 // pred_check_branch
    %18 = sbr.rel (0) target = $region5
  $region4: #{lstm_model_forward.1} parent=0 // pred_region
    _
  $region5: #{lstm_model_forward.1} parent=0 // pred_fallthru
    _
  // Predicated region
  $region6: #{lstm_model_forward.1} parent=0 // pred_check
    _
  $region7: #{lstm_model_forward.1} parent=0 // pred_check_branch
    %20 = sbr.rel (0) target = $region9
  $region8: #{lstm_model_forward.1} parent=0 // pred_region
    _
  $region9: #{lstm_model_forward.1} parent=0 // pred_fallthru
    _
  // Predicated region
  $region10: #{lstm_model_forward.1} parent=0 // pred_check
    _
  $region11: #{lstm_model_forward.1} parent=0 // pred_check_branch
    %22 = sbr.rel (0) target = $region13
  $region12: #{lstm_model_forward.1} parent=0 // pred_region
    _
  $region13: #{lstm_model_forward.1} parent=0 // pred_fallthru
    _
  // Predicated region
  $region14: #{lstm_model_forward.1} parent=0 // pred_check
    _
  $region15: #{lstm_model_forward.1} parent=0 // pred_check_branch
    %24 = sbr.rel (0) target = $region17
  $region16: #{lstm_model_forward.1} parent=0 // pred_region
    _
  $region17: #{lstm_model_forward.1} parent=0 // pred_fallthru
    _
  // Predicated region
  $region18: #{lstm_model_forward.1} parent=0 // pred_check
    _
  $region19: #{lstm_model_forward.1} parent=0 // pred_check_branch
    %26 = sbr.rel (0) target = $region21
  $region20: #{lstm_model_forward.1} parent=0 // pred_region
    _
  $region21: #{lstm_model_forward.1} parent=0 // pred_fallthru
    _
  // Predicated region
  $region22: #{lstm_model_forward.1} parent=0 // pred_check
    _
  $region23: #{lstm_model_forward.1} parent=0 // pred_check_branch
    %28 = sbr.rel (0) target = $region25
  $region24: #{lstm_model_forward.1} parent=0 // pred_region
    _
  $region25: #{lstm_model_forward.1} parent=0 // pred_fallthru
    _
  // Predicated region
  $region26: #{lstm_model_forward.1} parent=0 // pred_check
    _
  $region27: #{lstm_model_forward.1} parent=0 // pred_check_branch
    %30 = sbr.rel (0) target = $region29
  $region28: #{lstm_model_forward.1} parent=0 // pred_region
    _
  $region29: #{lstm_model_forward.1} parent=0 // pred_fallthru
    _
  // Predicated region
  $region30: #{lstm_model_forward.1} parent=0 // pred_check
    _
  $region31: #{lstm_model_forward.1} parent=0 // pred_check_branch
    %32 = sbr.rel (0) target = $region33
  $region32: #{lstm_model_forward.1} parent=0 // pred_region
    _
  $region33: #{lstm_model_forward.1} parent=0 // pred_fallthru
    _
  // Predicated region
  $region34: #{lstm_model_forward.1} parent=0 // pred_check
    _
  $region35: #{lstm_model_forward.1} parent=0 // pred_check_branch
    %34 = sbr.rel (0) target = $region37
  $region36: #{lstm_model_forward.1} parent=0 // pred_region
    _
  $region37: #{lstm_model_forward.1} parent=0 // pred_fallthru
    _
  // Predicated region
  $region38: #{lstm_model_forward.1} parent=0 // pred_check
    _
  $region39: #{lstm_model_forward.1} parent=0 // pred_check_branch
    %36 = sbr.rel (0) target = $region41
  $region40: #{lstm_model_forward.1} parent=0 // pred_region
    _
  $region41: #{lstm_model_forward.1} parent=0 // pred_fallthru
    _
  %v37 = vld [vmem:[%s0] sm:$0xff]
  %v38 = vld [vmem:[%s0 + $0x8] sm:$0xff]
  %v39 = vld [vmem:[%s0 + $0x10] sm:$0xff]
  %v40 = vld [vmem:[%s0 + $0x18] sm:$0xff]
  %v41 = vld [vmem:[%s0 + $0x20] sm:$0xff]
  %v42 = vld [vmem:[%s0 + $0x28] sm:$0xff]
  %v43 = vld [vmem:[%s0 + $0x30] sm:$0xff]
  %v44 = vld [vmem:[%s0 + $0x38] sm:$0xff]
  %v45 = vld [vmem:[%s1] sm:$0xff]
  %v46 = vld [vmem:[%s1 + $0x8] sm:$0xff]
  %v47 = vld [vmem:[%s3] sm:$0x1]
  %v49 = vlaneseq
  %v50 = vshrl.u32 %v49, 7
  %v51 = vsub.s32 0, %v50
  %v52 = vrot.slane %v47, %v51
  %vm54 = vcmask 130048
  %v56 = vsel %vm54, %v37, 0
  %v59 = vsel %vm54, %v38, 0
  %v62 = vsel %vm54, %v39, 0
  %v65 = vsel %vm54, %v40, 0
  %v68 = vsel %vm54, %v41, 0
  %v71 = vsel %vm54, %v42, 0
  %v74 = vsel %vm54, %v43, 0
  %v77 = vsel %vm54, %v44, 0
  %79 = vmatprep.subr.mxu0 0.0
  %80 = vmatpush1.msra.mxu0 %v45
  %81 = vmatprep.subr.mxu0 0.0
  %82 = vmatpush1.msra.mxu0 %v46
  %83 = vmatprep.subr.mxu0 0.0
  %84 = vmatpush1.msra.mxu0 0.0
  %85 = vmatprep.subr.mxu0 0.0
  %86 = vmatpush1.msra.mxu0 0.0
  %87 = vmatprep.subr.mxu0 0.0
  %88 = vmatpush1.msra.mxu0 0.0
  %89 = vmatprep.subr.mxu0 0.0
  %90 = vmatpush1.msra.mxu0 0.0
  %91 = vmatprep.subr.mxu0 0.0
  %92 = vmatpush1.msra.mxu0 0.0
  %93 = vmatprep.subr.mxu0 0.0
  %94 = vmatpush1.msra.mxu0 0.0
  %95 = vmatprep.subr.mxu0 0.0
  %96 = vmatpush1.msra.mxu0 0.0
  %97 = vmatprep.subr.mxu0 0.0
  %98 = vmatpush1.msra.mxu0 0.0
  %99 = vmatprep.subr.mxu0 0.0
  %100 = vmatpush1.msra.mxu0 0.0
  %101 = vmatprep.subr.mxu0 0.0
  %102 = vmatpush1.msra.mxu0 0.0
  %103 = vmatprep.subr.mxu0 0.0
  %104 = vmatpush1.msra.mxu0 0.0
  %105 = vmatprep.subr.mxu0 0.0
  %106 = vmatpush1.msra.mxu0 0.0
  %107 = vmatprep.subr.mxu0 0.0
  %108 = vmatpush1.msra.mxu0 0.0
  %109 = vmatprep.subr.mxu0 0.0
  %110 = vmatpush1.msra.mxu0 0.0
  %111 = vmatprep.subr.mxu0 0.0
  %112 = vmatpush1.msra.mxu0 0.0
  %113 = vmatprep.subr.mxu0 0.0
  %114 = vmatpush1.msra.mxu0 0.0
  %115 = vmatprep.subr.mxu0 0.0
  %116 = vmatpush1.msra.mxu0 0.0
  %117 = vmatprep.subr.mxu0 0.0
  %118 = vmatpush1.msra.mxu0 0.0
  %119 = vmatprep.subr.mxu0 0.0
  %120 = vmatpush1.msra.mxu0 0.0
  %121 = vmatprep.subr.mxu0 0.0
  %122 = vmatpush1.msra.mxu0 0.0
  %123 = vmatprep.subr.mxu0 0.0
  %124 = vmatpush1.msra.mxu0 0.0
  %125 = vmatprep.subr.mxu0 0.0
  %126 = vmatpush1.msra.mxu0 0.0
  %127 = vmatprep.subr.mxu0 0.0
  %128 = vmatpush1.msra.mxu0 0.0
  %129 = vmatprep.subr.mxu0 0.0
  %130 = vmatpush1.msra.mxu0 0.0
  %131 = vmatprep.subr.mxu0 0.0
  %132 = vmatpush1.msra.mxu0 0.0
  %133 = vmatprep.subr.mxu0 0.0
  %134 = vmatpush1.msra.mxu0 0.0
  %135 = vmatprep.subr.mxu0 0.0
  %136 = vmatpush1.msra.mxu0 0.0
  %137 = vmatprep.subr.mxu0 0.0
  %138 = vmatpush1.msra.mxu0 0.0
  %139 = vmatprep.subr.mxu0 0.0
  %140 = vmatpush1.msra.mxu0 0.0
  %141 = vmatprep.subr.mxu0 0.0
  %142 = vmatpush1.msra.mxu0 0.0
  %143 = vmatprep.mubr.f32.mxu0 0.0
  %144 = vmatmul.mubr.f32.gmra.mrb[0].mxu0 %v56
  %v145 = vpop.f32.mrb[0].mxu0
  %v146 = vadd.f32 %v52, %v145
  %v147 = vpop.f32.mrb[0].mxu0
  %148 = vmatprep.mubr.f32.mxu0 0.0
  %149 = vmatmul.mubr.f32.gmra.mrb[0].mxu0 %v59
  %v150 = vpop.f32.mrb[0].mxu0
  %v151 = vadd.f32 %v52, %v150
  %v152 = vpop.f32.mrb[0].mxu0
  %153 = vmatprep.mubr.f32.mxu0 0.0
  %154 = vmatmul.mubr.f32.gmra.mrb[0].mxu0 %v62
  %v155 = vpop.f32.mrb[0].mxu0
  %v156 = vadd.f32 %v52, %v155
  %v157 = vpop.f32.mrb[0].mxu0
  %158 = vmatprep.mubr.f32.mxu0 0.0
  %159 = vmatmul.mubr.f32.gmra.mrb[0].mxu0 %v65
  %v160 = vpop.f32.mrb[0].mxu0
  %v161 = vadd.f32 %v52, %v160
  %v162 = vpop.f32.mrb[0].mxu0
  %163 = vmatprep.mubr.f32.mxu0 0.0
  %164 = vmatmul.mubr.f32.gmra.mrb[0].mxu0 %v68
  %v165 = vpop.f32.mrb[0].mxu0
  %v166 = vadd.f32 %v52, %v165
  %v167 = vpop.f32.mrb[0].mxu0
  %168 = vmatprep.mubr.f32.mxu0 0.0
  %169 = vmatmul.mubr.f32.gmra.mrb[0].mxu0 %v71
  %v170 = vpop.f32.mrb[0].mxu0
  %v171 = vadd.f32 %v52, %v170
  %v172 = vpop.f32.mrb[0].mxu0
  %173 = vmatprep.mubr.f32.mxu0 0.0
  %174 = vmatmul.mubr.f32.gmra.mrb[0].mxu0 %v74
  %v175 = vpop.f32.mrb[0].mxu0
  %v176 = vadd.f32 %v52, %v175
  %v177 = vpop.f32.mrb[0].mxu0
  %178 = vmatprep.mubr.f32.mxu0 0.0
  %179 = vmatmul.mubr.f32.gmra.mrb[0].mxu0 %v77
  %v180 = vpop.f32.mrb[0].mxu0
  %v181 = vadd.f32 %v52, %v180
  %v182 = vpop.f32.mrb[0].mxu0
  %183 = vdwg.mxu0
  %v184 = vld [vmem:[%s2] sm:$0xff]
  %v185 = vld [vmem:[%s2 + $0x8] sm:$0xff]
  %v186 = vld [vmem:[%s2 + $0x10] sm:$0xff]
  %v187 = vld [vmem:[%s2 + $0x18] sm:$0xff]
  %vm188 = vcmask 261120
  %v190 = vsel %vm188, 0.0, 0
  %192 = vmatprep.subr.mxu0 0.0
  %193 = vmatpush1.msra.mxu0 %v184
  %194 = vmatprep.subr.mxu0 0.0
  %195 = vmatpush1.msra.mxu0 %v185
  %196 = vmatprep.subr.mxu0 0.0
  %197 = vmatpush1.msra.mxu0 %v186
  %198 = vmatprep.subr.mxu0 0.0
  %199 = vmatpush1.msra.mxu0 %v187
  %200 = vmatprep.subr.mxu0 0.0
  %201 = vmatpush1.msra.mxu0 0.0
  %202 = vmatprep.subr.mxu0 0.0
  %203 = vmatpush1.msra.mxu0 0.0
  %204 = vmatprep.subr.mxu0 0.0
  %205 = vmatpush1.msra.mxu0 0.0
  %206 = vmatprep.subr.mxu0 0.0
  %207 = vmatpush1.msra.mxu0 0.0
  %208 = vmatprep.subr.mxu0 0.0
  %209 = vmatpush1.msra.mxu0 0.0
  %210 = vmatprep.subr.mxu0 0.0
  %211 = vmatpush1.msra.mxu0 0.0
  %212 = vmatprep.subr.mxu0 0.0
  %213 = vmatpush1.msra.mxu0 0.0
  %214 = vmatprep.subr.mxu0 0.0
  %215 = vmatpush1.msra.mxu0 0.0
  %216 = vmatprep.subr.mxu0 0.0
  %217 = vmatpush1.msra.mxu0 0.0
  %218 = vmatprep.subr.mxu0 0.0
  %219 = vmatpush1.msra.mxu0 0.0
  %220 = vmatprep.subr.mxu0 0.0
  %221 = vmatpush1.msra.mxu0 0.0
  %222 = vmatprep.subr.mxu0 0.0
  %223 = vmatpush1.msra.mxu0 0.0
  %224 = vmatprep.subr.mxu0 0.0
  %225 = vmatpush1.msra.mxu0 0.0
  %226 = vmatprep.subr.mxu0 0.0
  %227 = vmatpush1.msra.mxu0 0.0
  %228 = vmatprep.subr.mxu0 0.0
  %229 = vmatpush1.msra.mxu0 0.0
  %230 = vmatprep.subr.mxu0 0.0
  %231 = vmatpush1.msra.mxu0 0.0
  %232 = vmatprep.subr.mxu0 0.0
  %233 = vmatpush1.msra.mxu0 0.0
  %234 = vmatprep.subr.mxu0 0.0
  %235 = vmatpush1.msra.mxu0 0.0
  %236 = vmatprep.subr.mxu0 0.0
  %237 = vmatpush1.msra.mxu0 0.0
  %238 = vmatprep.subr.mxu0 0.0
  %239 = vmatpush1.msra.mxu0 0.0
  %240 = vmatprep.subr.mxu0 0.0
  %241 = vmatpush1.msra.mxu0 0.0
  %242 = vmatprep.subr.mxu0 0.0
  %243 = vmatpush1.msra.mxu0 0.0
  %244 = vmatprep.subr.mxu0 0.0
  %245 = vmatpush1.msra.mxu0 0.0
  %246 = vmatprep.subr.mxu0 0.0
  %247 = vmatpush1.msra.mxu0 0.0
  %248 = vmatprep.subr.mxu0 0.0
  %249 = vmatpush1.msra.mxu0 0.0
  %250 = vmatprep.subr.mxu0 0.0
  %251 = vmatpush1.msra.mxu0 0.0
  %252 = vmatprep.subr.mxu0 0.0
  %253 = vmatpush1.msra.mxu0 0.0
  %254 = vmatprep.subr.mxu0 0.0
  %255 = vmatpush1.msra.mxu0 0.0
  %256 = vmatprep.mubr.f32.mxu0 0.0
  %257 = vmatmul.mubr.f32.gmra.mrb[0].mxu0 %v190
  %v258 = vpop.f32.mrb[0].mxu0
  %v259 = vadd.f32 0.0, %v258
  %v260 = vpop.f32.mrb[0].mxu0
  %261 = vdwg.mxu0
  %v262 = vadd.f32 %v146, %v259
  %v263 = vxor.u32 %v262, 2147483648
  %v264 = vmul.f32 %v263, 1.442695
  %v265 = vpow.pop %v264
  %v266 = vadd.f32 %v265, 1.0
  %v267 = vrcp.pop %v266
  %v268 = vmul.f32 1.0, %v267
  %v269 = vtanh.pop %v262
  %v270 = vmul.f32 %v268, 0.0
  %272 = vrot.lane.b32.xlu0 %v269, 64
  %v273 = vpop.permute.xlu0 %272
  %v275 = vmul.f32 %v268, %v273
  %277 = vrot.lane.b32.xlu0 %v275, 32
  %v278 = vpop.permute.xlu0 %277
  %v280 = vadd.f32 %v270, %v278
  %v281 = vtanh.pop %v280
  %283 = vrot.lane.b32.xlu0 %v281, 64
  %v284 = vpop.permute.xlu0 %283
  %v286 = vmul.f32 %v268, %v284
  %288 = vrot.lane.b32.xlu0 %v286, 32
  %v289 = vpop.permute.xlu0 %288
  %v290 = vsel %vm188, %v289, 0
  %292 = vmatprep.subr.mxu0 0.0
  %293 = vmatpush1.msra.mxu0 %v184
  %294 = vmatprep.subr.mxu0 0.0
  %295 = vmatpush1.msra.mxu0 %v185
  %296 = vmatprep.subr.mxu0 0.0
  %297 = vmatpush1.msra.mxu0 %v186
  %298 = vmatprep.subr.mxu0 0.0
  %299 = vmatpush1.msra.mxu0 %v187
  %300 = vmatprep.subr.mxu0 0.0
  %301 = vmatpush1.msra.mxu0 0.0
  %302 = vmatprep.subr.mxu0 0.0
  %303 = vmatpush1.msra.mxu0 0.0
  %304 = vmatprep.subr.mxu0 0.0
  %305 = vmatpush1.msra.mxu0 0.0
  %306 = vmatprep.subr.mxu0 0.0
  %307 = vmatpush1.msra.mxu0 0.0
  %308 = vmatprep.subr.mxu0 0.0
  %309 = vmatpush1.msra.mxu0 0.0
  %310 = vmatprep.subr.mxu0 0.0
  %311 = vmatpush1.msra.mxu0 0.0
  %312 = vmatprep.subr.mxu0 0.0
  %313 = vmatpush1.msra.mxu0 0.0
  %314 = vmatprep.subr.mxu0 0.0
  %315 = vmatpush1.msra.mxu0 0.0
  %316 = vmatprep.subr.mxu0 0.0
  %317 = vmatpush1.msra.mxu0 0.0
  %318 = vmatprep.subr.mxu0 0.0
  %319 = vmatpush1.msra.mxu0 0.0
  %320 = vmatprep.subr.mxu0 0.0
  %321 = vmatpush1.msra.mxu0 0.0
  %322 = vmatprep.subr.mxu0 0.0
  %323 = vmatpush1.msra.mxu0 0.0
  %324 = vmatprep.subr.mxu0 0.0
  %325 = vmatpush1.msra.mxu0 0.0
  %326 = vmatprep.subr.mxu0 0.0
  %327 = vmatpush1.msra.mxu0 0.0
  %328 = vmatprep.subr.mxu0 0.0
  %329 = vmatpush1.msra.mxu0 0.0
  %330 = vmatprep.subr.mxu0 0.0
  %331 = vmatpush1.msra.mxu0 0.0
  %332 = vmatprep.subr.mxu0 0.0
  %333 = vmatpush1.msra.mxu0 0.0
  %334 = vmatprep.subr.mxu0 0.0
  %335 = vmatpush1.msra.mxu0 0.0
  %336 = vmatprep.subr.mxu0 0.0
  %337 = vmatpush1.msra.mxu0 0.0
  %338 = vmatprep.subr.mxu0 0.0
  %339 = vmatpush1.msra.mxu0 0.0
  %340 = vmatprep.subr.mxu0 0.0
  %341 = vmatpush1.msra.mxu0 0.0
  %342 = vmatprep.subr.mxu0 0.0
  %343 = vmatpush1.msra.mxu0 0.0
  %344 = vmatprep.subr.mxu0 0.0
  %345 = vmatpush1.msra.mxu0 0.0
  %346 = vmatprep.subr.mxu0 0.0
  %347 = vmatpush1.msra.mxu0 0.0
  %348 = vmatprep.subr.mxu0 0.0
  %349 = vmatpush1.msra.mxu0 0.0
  %350 = vmatprep.subr.mxu0 0.0
  %351 = vmatpush1.msra.mxu0 0.0
  %352 = vmatprep.subr.mxu0 0.0
  %353 = vmatpush1.msra.mxu0 0.0
  %354 = vmatprep.subr.mxu0 0.0
  %355 = vmatpush1.msra.mxu0 0.0
  %356 = vmatprep.mubr.f32.mxu0 0.0
  %357 = vmatmul.mubr.f32.gmra.mrb[0].mxu0 %v290
  %v358 = vpop.f32.mrb[0].mxu0
  %v359 = vadd.f32 0.0, %v358
  %v360 = vpop.f32.mrb[0].mxu0
  %361 = vdwg.mxu0
  %v362 = vadd.f32 %v151, %v359
  %v363 = vxor.u32 %v362, 2147483648
  %v364 = vmul.f32 %v363, 1.442695
  %v365 = vpow.pop %v364
  %v366 = vadd.f32 %v365, 1.0
  %v367 = vrcp.pop %v366
  %v368 = vmul.f32 1.0, %v367
  %v369 = vtanh.pop %v362
  %v370 = vmul.f32 %v368, %v280
  %372 = vrot.lane.b32.xlu0 %v369, 64
  %v373 = vpop.permute.xlu0 %372
  %v375 = vmul.f32 %v368, %v373
  %377 = vrot.lane.b32.xlu0 %v375, 32
  %v378 = vpop.permute.xlu0 %377
  %v380 = vadd.f32 %v370, %v378
  %v381 = vtanh.pop %v380
  %383 = vrot.lane.b32.xlu0 %v381, 64
  %v384 = vpop.permute.xlu0 %383
  %v386 = vmul.f32 %v368, %v384
  %388 = vrot.lane.b32.xlu0 %v386, 32
  %v389 = vpop.permute.xlu0 %388
  %v390 = vsel %vm188, %v389, 0
  %392 = vmatprep.subr.mxu0 0.0
  %393 = vmatpush1.msra.mxu0 %v184
  %394 = vmatprep.subr.mxu0 0.0
  %395 = vmatpush1.msra.mxu0 %v185
  %396 = vmatprep.subr.mxu0 0.0
  %397 = vmatpush1.msra.mxu0 %v186
  %398 = vmatprep.subr.mxu0 0.0
  %399 = vmatpush1.msra.mxu0 %v187
  %400 = vmatprep.subr.mxu0 0.0
  %401 = vmatpush1.msra.mxu0 0.0
  %402 = vmatprep.subr.mxu0 0.0
  %403 = vmatpush1.msra.mxu0 0.0
  %404 = vmatprep.subr.mxu0 0.0
  %405 = vmatpush1.msra.mxu0 0.0
  %406 = vmatprep.subr.mxu0 0.0
  %407 = vmatpush1.msra.mxu0 0.0
  %408 = vmatprep.subr.mxu0 0.0
  %409 = vmatpush1.msra.mxu0 0.0
  %410 = vmatprep.subr.mxu0 0.0
  %411 = vmatpush1.msra.mxu0 0.0
  %412 = vmatprep.subr.mxu0 0.0
  %413 = vmatpush1.msra.mxu0 0.0
  %414 = vmatprep.subr.mxu0 0.0
  %415 = vmatpush1.msra.mxu0 0.0
  %416 = vmatprep.subr.mxu0 0.0
  %417 = vmatpush1.msra.mxu0 0.0
  %418 = vmatprep.subr.mxu0 0.0
  %419 = vmatpush1.msra.mxu0 0.0
  %420 = vmatprep.subr.mxu0 0.0
  %421 = vmatpush1.msra.mxu0 0.0
  %422 = vmatprep.subr.mxu0 0.0
  %423 = vmatpush1.msra.mxu0 0.0
  %424 = vmatprep.subr.mxu0 0.0
  %425 = vmatpush1.msra.mxu0 0.0
  %426 = vmatprep.subr.mxu0 0.0
  %427 = vmatpush1.msra.mxu0 0.0
  %428 = vmatprep.subr.mxu0 0.0
  %429 = vmatpush1.msra.mxu0 0.0
  %430 = vmatprep.subr.mxu0 0.0
  %431 = vmatpush1.msra.mxu0 0.0
  %432 = vmatprep.subr.mxu0 0.0
  %433 = vmatpush1.msra.mxu0 0.0
  %434 = vmatprep.subr.mxu0 0.0
  %435 = vmatpush1.msra.mxu0 0.0
  %436 = vmatprep.subr.mxu0 0.0
  %437 = vmatpush1.msra.mxu0 0.0
  %438 = vmatprep.subr.mxu0 0.0
  %439 = vmatpush1.msra.mxu0 0.0
  %440 = vmatprep.subr.mxu0 0.0
  %441 = vmatpush1.msra.mxu0 0.0
  %442 = vmatprep.subr.mxu0 0.0
  %443 = vmatpush1.msra.mxu0 0.0
  %444 = vmatprep.subr.mxu0 0.0
  %445 = vmatpush1.msra.mxu0 0.0
  %446 = vmatprep.subr.mxu0 0.0
  %447 = vmatpush1.msra.mxu0 0.0
  %448 = vmatprep.subr.mxu0 0.0
  %449 = vmatpush1.msra.mxu0 0.0
  %450 = vmatprep.subr.mxu0 0.0
  %451 = vmatpush1.msra.mxu0 0.0
  %452 = vmatprep.subr.mxu0 0.0
  %453 = vmatpush1.msra.mxu0 0.0
  %454 = vmatprep.subr.mxu0 0.0
  %455 = vmatpush1.msra.mxu0 0.0
  %456 = vmatprep.mubr.f32.mxu0 0.0
  %457 = vmatmul.mubr.f32.gmra.mrb[0].mxu0 %v390
  %v458 = vpop.f32.mrb[0].mxu0
  %v459 = vadd.f32 0.0, %v458
  %v460 = vpop.f32.mrb[0].mxu0
  %461 = vdwg.mxu0
  %v462 = vadd.f32 %v156, %v459
  %v463 = vxor.u32 %v462, 2147483648
  %v464 = vmul.f32 %v463, 1.442695
  %v465 = vpow.pop %v464
  %v466 = vadd.f32 %v465, 1.0
  %v467 = vrcp.pop %v466
  %v468 = vmul.f32 1.0, %v467
  %v469 = vtanh.pop %v462
  %v470 = vmul.f32 %v468, %v380
  %472 = vrot.lane.b32.xlu0 %v469, 64
  %v473 = vpop.permute.xlu0 %472
  %v475 = vmul.f32 %v468, %v473
  %477 = vrot.lane.b32.xlu0 %v475, 32
  %v478 = vpop.permute.xlu0 %477
  %v480 = vadd.f32 %v470, %v478
  %v481 = vtanh.pop %v480
  %483 = vrot.lane.b32.xlu0 %v481, 64
  %v484 = vpop.permute.xlu0 %483
  %v486 = vmul.f32 %v468, %v484
  %488 = vrot.lane.b32.xlu0 %v486, 32
  %v489 = vpop.permute.xlu0 %488
  %v490 = vsel %vm188, %v489, 0
  %492 = vmatprep.subr.mxu0 0.0
  %493 = vmatpush1.msra.mxu0 %v184
  %494 = vmatprep.subr.mxu0 0.0
  %495 = vmatpush1.msra.mxu0 %v185
  %496 = vmatprep.subr.mxu0 0.0
  %497 = vmatpush1.msra.mxu0 %v186
  %498 = vmatprep.subr.mxu0 0.0
  %499 = vmatpush1.msra.mxu0 %v187
  %500 = vmatprep.subr.mxu0 0.0
  %501 = vmatpush1.msra.mxu0 0.0
  %502 = vmatprep.subr.mxu0 0.0
  %503 = vmatpush1.msra.mxu0 0.0
  %504 = vmatprep.subr.mxu0 0.0
  %505 = vmatpush1.msra.mxu0 0.0
  %506 = vmatprep.subr.mxu0 0.0
  %507 = vmatpush1.msra.mxu0 0.0
  %508 = vmatprep.subr.mxu0 0.0
  %509 = vmatpush1.msra.mxu0 0.0
  %510 = vmatprep.subr.mxu0 0.0
  %511 = vmatpush1.msra.mxu0 0.0
  %512 = vmatprep.subr.mxu0 0.0
  %513 = vmatpush1.msra.mxu0 0.0
  %514 = vmatprep.subr.mxu0 0.0
  %515 = vmatpush1.msra.mxu0 0.0
  %516 = vmatprep.subr.mxu0 0.0
  %517 = vmatpush1.msra.mxu0 0.0
  %518 = vmatprep.subr.mxu0 0.0
  %519 = vmatpush1.msra.mxu0 0.0
  %520 = vmatprep.subr.mxu0 0.0
  %521 = vmatpush1.msra.mxu0 0.0
  %522 = vmatprep.subr.mxu0 0.0
  %523 = vmatpush1.msra.mxu0 0.0
  %524 = vmatprep.subr.mxu0 0.0
  %525 = vmatpush1.msra.mxu0 0.0
  %526 = vmatprep.subr.mxu0 0.0
  %527 = vmatpush1.msra.mxu0 0.0
  %528 = vmatprep.subr.mxu0 0.0
  %529 = vmatpush1.msra.mxu0 0.0
  %530 = vmatprep.subr.mxu0 0.0
  %531 = vmatpush1.msra.mxu0 0.0
  %532 = vmatprep.subr.mxu0 0.0
  %533 = vmatpush1.msra.mxu0 0.0
  %534 = vmatprep.subr.mxu0 0.0
  %535 = vmatpush1.msra.mxu0 0.0
  %536 = vmatprep.subr.mxu0 0.0
  %537 = vmatpush1.msra.mxu0 0.0
  %538 = vmatprep.subr.mxu0 0.0
  %539 = vmatpush1.msra.mxu0 0.0
  %540 = vmatprep.subr.mxu0 0.0
  %541 = vmatpush1.msra.mxu0 0.0
  %542 = vmatprep.subr.mxu0 0.0
  %543 = vmatpush1.msra.mxu0 0.0
  %544 = vmatprep.subr.mxu0 0.0
  %545 = vmatpush1.msra.mxu0 0.0
  %546 = vmatprep.subr.mxu0 0.0
  %547 = vmatpush1.msra.mxu0 0.0
  %548 = vmatprep.subr.mxu0 0.0
  %549 = vmatpush1.msra.mxu0 0.0
  %550 = vmatprep.subr.mxu0 0.0
  %551 = vmatpush1.msra.mxu0 0.0
  %552 = vmatprep.subr.mxu0 0.0
  %553 = vmatpush1.msra.mxu0 0.0
  %554 = vmatprep.subr.mxu0 0.0
  %555 = vmatpush1.msra.mxu0 0.0
  %556 = vmatprep.mubr.f32.mxu0 0.0
  %557 = vmatmul.mubr.f32.gmra.mrb[0].mxu0 %v490
  %v558 = vpop.f32.mrb[0].mxu0
  %v559 = vadd.f32 0.0, %v558
  %v560 = vpop.f32.mrb[0].mxu0
  %561 = vdwg.mxu0
  %v562 = vadd.f32 %v161, %v559
  %v563 = vxor.u32 %v562, 2147483648
  %v564 = vmul.f32 %v563, 1.442695
  %v565 = vpow.pop %v564
  %v566 = vadd.f32 %v565, 1.0
  %v567 = vrcp.pop %v566
  %v568 = vmul.f32 1.0, %v567
  %v569 = vtanh.pop %v562
  %v570 = vmul.f32 %v568, %v480
  %572 = vrot.lane.b32.xlu0 %v569, 64
  %v573 = vpop.permute.xlu0 %572
  %v575 = vmul.f32 %v568, %v573
  %577 = vrot.lane.b32.xlu0 %v575, 32
  %v578 = vpop.permute.xlu0 %577
  %v580 = vadd.f32 %v570, %v578
  %v581 = vtanh.pop %v580
  %583 = vrot.lane.b32.xlu0 %v581, 64
  %v584 = vpop.permute.xlu0 %583
  %v586 = vmul.f32 %v568, %v584
  %588 = vrot.lane.b32.xlu0 %v586, 32
  %v589 = vpop.permute.xlu0 %588
  %v590 = vsel %vm188, %v589, 0
  %592 = vmatprep.subr.mxu0 0.0
  %593 = vmatpush1.msra.mxu0 %v184
  %594 = vmatprep.subr.mxu0 0.0
  %595 = vmatpush1.msra.mxu0 %v185
  %596 = vmatprep.subr.mxu0 0.0
  %597 = vmatpush1.msra.mxu0 %v186
  %598 = vmatprep.subr.mxu0 0.0
  %599 = vmatpush1.msra.mxu0 %v187
  %600 = vmatprep.subr.mxu0 0.0
  %601 = vmatpush1.msra.mxu0 0.0
  %602 = vmatprep.subr.mxu0 0.0
  %603 = vmatpush1.msra.mxu0 0.0
  %604 = vmatprep.subr.mxu0 0.0
  %605 = vmatpush1.msra.mxu0 0.0
  %606 = vmatprep.subr.mxu0 0.0
  %607 = vmatpush1.msra.mxu0 0.0
  %608 = vmatprep.subr.mxu0 0.0
  %609 = vmatpush1.msra.mxu0 0.0
  %610 = vmatprep.subr.mxu0 0.0
  %611 = vmatpush1.msra.mxu0 0.0
  %612 = vmatprep.subr.mxu0 0.0
  %613 = vmatpush1.msra.mxu0 0.0
  %614 = vmatprep.subr.mxu0 0.0
  %615 = vmatpush1.msra.mxu0 0.0
  %616 = vmatprep.subr.mxu0 0.0
  %617 = vmatpush1.msra.mxu0 0.0
  %618 = vmatprep.subr.mxu0 0.0
  %619 = vmatpush1.msra.mxu0 0.0
  %620 = vmatprep.subr.mxu0 0.0
  %621 = vmatpush1.msra.mxu0 0.0
  %622 = vmatprep.subr.mxu0 0.0
  %623 = vmatpush1.msra.mxu0 0.0
  %624 = vmatprep.subr.mxu0 0.0
  %625 = vmatpush1.msra.mxu0 0.0
  %626 = vmatprep.subr.mxu0 0.0
  %627 = vmatpush1.msra.mxu0 0.0
  %628 = vmatprep.subr.mxu0 0.0
  %629 = vmatpush1.msra.mxu0 0.0
  %630 = vmatprep.subr.mxu0 0.0
  %631 = vmatpush1.msra.mxu0 0.0
  %632 = vmatprep.subr.mxu0 0.0
  %633 = vmatpush1.msra.mxu0 0.0
  %634 = vmatprep.subr.mxu0 0.0
  %635 = vmatpush1.msra.mxu0 0.0
  %636 = vmatprep.subr.mxu0 0.0
  %637 = vmatpush1.msra.mxu0 0.0
  %638 = vmatprep.subr.mxu0 0.0
  %639 = vmatpush1.msra.mxu0 0.0
  %640 = vmatprep.subr.mxu0 0.0
  %641 = vmatpush1.msra.mxu0 0.0
  %642 = vmatprep.subr.mxu0 0.0
  %643 = vmatpush1.msra.mxu0 0.0
  %644 = vmatprep.subr.mxu0 0.0
  %645 = vmatpush1.msra.mxu0 0.0
  %646 = vmatprep.subr.mxu0 0.0
  %647 = vmatpush1.msra.mxu0 0.0
  %648 = vmatprep.subr.mxu0 0.0
  %649 = vmatpush1.msra.mxu0 0.0
  %650 = vmatprep.subr.mxu0 0.0
  %651 = vmatpush1.msra.mxu0 0.0
  %652 = vmatprep.subr.mxu0 0.0
  %653 = vmatpush1.msra.mxu0 0.0
  %654 = vmatprep.subr.mxu0 0.0
  %655 = vmatpush1.msra.mxu0 0.0
  %656 = vmatprep.mubr.f32.mxu0 0.0
  %657 = vmatmul.mubr.f32.gmra.mrb[0].mxu0 %v590
  %v658 = vpop.f32.mrb[0].mxu0
  %v659 = vadd.f32 0.0, %v658
  %v660 = vpop.f32.mrb[0].mxu0
  %661 = vdwg.mxu0
  %v662 = vadd.f32 %v166, %v659
  %v663 = vxor.u32 %v662, 2147483648
  %v664 = vmul.f32 %v663, 1.442695
  %v665 = vpow.pop %v664
  %v666 = vadd.f32 %v665, 1.0
  %v667 = vrcp.pop %v666
  %v668 = vmul.f32 1.0, %v667
  %v669 = vtanh.pop %v662
  %v670 = vmul.f32 %v668, %v580
  %672 = vrot.lane.b32.xlu0 %v669, 64
  %v673 = vpop.permute.xlu0 %672
  %v675 = vmul.f32 %v668, %v673
  %677 = vrot.lane.b32.xlu0 %v675, 32
  %v678 = vpop.permute.xlu0 %677
  %v680 = vadd.f32 %v670, %v678
  %v681 = vtanh.pop %v680
  %683 = vrot.lane.b32.xlu0 %v681, 64
  %v684 = vpop.permute.xlu0 %683
  %v686 = vmul.f32 %v668, %v684
  %688 = vrot.lane.b32.xlu0 %v686, 32
  %v689 = vpop.permute.xlu0 %688
  %v690 = vsel %vm188, %v689, 0
  %692 = vmatprep.subr.mxu0 0.0
  %693 = vmatpush1.msra.mxu0 %v184
  %694 = vmatprep.subr.mxu0 0.0
  %695 = vmatpush1.msra.mxu0 %v185
  %696 = vmatprep.subr.mxu0 0.0
  %697 = vmatpush1.msra.mxu0 %v186
  %698 = vmatprep.subr.mxu0 0.0
  %699 = vmatpush1.msra.mxu0 %v187
  %700 = vmatprep.subr.mxu0 0.0
  %701 = vmatpush1.msra.mxu0 0.0
  %702 = vmatprep.subr.mxu0 0.0
  %703 = vmatpush1.msra.mxu0 0.0
  %704 = vmatprep.subr.mxu0 0.0
  %705 = vmatpush1.msra.mxu0 0.0
  %706 = vmatprep.subr.mxu0 0.0
  %707 = vmatpush1.msra.mxu0 0.0
  %708 = vmatprep.subr.mxu0 0.0
  %709 = vmatpush1.msra.mxu0 0.0
  %710 = vmatprep.subr.mxu0 0.0
  %711 = vmatpush1.msra.mxu0 0.0
  %712 = vmatprep.subr.mxu0 0.0
  %713 = vmatpush1.msra.mxu0 0.0
  %714 = vmatprep.subr.mxu0 0.0
  %715 = vmatpush1.msra.mxu0 0.0
  %716 = vmatprep.subr.mxu0 0.0
  %717 = vmatpush1.msra.mxu0 0.0
  %718 = vmatprep.subr.mxu0 0.0
  %719 = vmatpush1.msra.mxu0 0.0
  %720 = vmatprep.subr.mxu0 0.0
  %721 = vmatpush1.msra.mxu0 0.0
  %722 = vmatprep.subr.mxu0 0.0
  %723 = vmatpush1.msra.mxu0 0.0
  %724 = vmatprep.subr.mxu0 0.0
  %725 = vmatpush1.msra.mxu0 0.0
  %726 = vmatprep.subr.mxu0 0.0
  %727 = vmatpush1.msra.mxu0 0.0
  %728 = vmatprep.subr.mxu0 0.0
  %729 = vmatpush1.msra.mxu0 0.0
  %730 = vmatprep.subr.mxu0 0.0
  %731 = vmatpush1.msra.mxu0 0.0
  %732 = vmatprep.subr.mxu0 0.0
  %733 = vmatpush1.msra.mxu0 0.0
  %734 = vmatprep.subr.mxu0 0.0
  %735 = vmatpush1.msra.mxu0 0.0
  %736 = vmatprep.subr.mxu0 0.0
  %737 = vmatpush1.msra.mxu0 0.0
  %738 = vmatprep.subr.mxu0 0.0
  %739 = vmatpush1.msra.mxu0 0.0
  %740 = vmatprep.subr.mxu0 0.0
  %741 = vmatpush1.msra.mxu0 0.0
  %742 = vmatprep.subr.mxu0 0.0
  %743 = vmatpush1.msra.mxu0 0.0
  %744 = vmatprep.subr.mxu0 0.0
  %745 = vmatpush1.msra.mxu0 0.0
  %746 = vmatprep.subr.mxu0 0.0
  %747 = vmatpush1.msra.mxu0 0.0
  %748 = vmatprep.subr.mxu0 0.0
  %749 = vmatpush1.msra.mxu0 0.0
  %750 = vmatprep.subr.mxu0 0.0
  %751 = vmatpush1.msra.mxu0 0.0
  %752 = vmatprep.subr.mxu0 0.0
  %753 = vmatpush1.msra.mxu0 0.0
  %754 = vmatprep.subr.mxu0 0.0
  %755 = vmatpush1.msra.mxu0 0.0
  %756 = vmatprep.mubr.f32.mxu0 0.0
  %757 = vmatmul.mubr.f32.gmra.mrb[0].mxu0 %v690
  %v758 = vpop.f32.mrb[0].mxu0
  %v759 = vadd.f32 0.0, %v758
  %v760 = vpop.f32.mrb[0].mxu0
  %761 = vdwg.mxu0
  %v762 = vadd.f32 %v171, %v759
  %v763 = vxor.u32 %v762, 2147483648
  %v764 = vmul.f32 %v763, 1.442695
  %v765 = vpow.pop %v764
  %v766 = vadd.f32 %v765, 1.0
  %v767 = vrcp.pop %v766
  %v768 = vmul.f32 1.0, %v767
  %v769 = vtanh.pop %v762
  %v770 = vmul.f32 %v768, %v680
  %772 = vrot.lane.b32.xlu0 %v769, 64
  %v773 = vpop.permute.xlu0 %772
  %v775 = vmul.f32 %v768, %v773
  %777 = vrot.lane.b32.xlu0 %v775, 32
  %v778 = vpop.permute.xlu0 %777
  %v780 = vadd.f32 %v770, %v778
  %v781 = vtanh.pop %v780
  %783 = vrot.lane.b32.xlu0 %v781, 64
  %v784 = vpop.permute.xlu0 %783
  %v786 = vmul.f32 %v768, %v784
  %788 = vrot.lane.b32.xlu0 %v786, 32
  %v789 = vpop.permute.xlu0 %788
  %v790 = vsel %vm188, %v789, 0
  %792 = vmatprep.subr.mxu0 0.0
  %793 = vmatpush1.msra.mxu0 %v184
  %794 = vmatprep.subr.mxu0 0.0
  %795 = vmatpush1.msra.mxu0 %v185
  %796 = vmatprep.subr.mxu0 0.0
  %797 = vmatpush1.msra.mxu0 %v186
  %798 = vmatprep.subr.mxu0 0.0
  %799 = vmatpush1.msra.mxu0 %v187
  %800 = vmatprep.subr.mxu0 0.0
  %801 = vmatpush1.msra.mxu0 0.0
  %802 = vmatprep.subr.mxu0 0.0
  %803 = vmatpush1.msra.mxu0 0.0
  %804 = vmatprep.subr.mxu0 0.0
  %805 = vmatpush1.msra.mxu0 0.0
  %806 = vmatprep.subr.mxu0 0.0
  %807 = vmatpush1.msra.mxu0 0.0
  %808 = vmatprep.subr.mxu0 0.0
  %809 = vmatpush1.msra.mxu0 0.0
  %810 = vmatprep.subr.mxu0 0.0
  %811 = vmatpush1.msra.mxu0 0.0
  %812 = vmatprep.subr.mxu0 0.0
  %813 = vmatpush1.msra.mxu0 0.0
  %814 = vmatprep.subr.mxu0 0.0
  %815 = vmatpush1.msra.mxu0 0.0
  %816 = vmatprep.subr.mxu0 0.0
  %817 = vmatpush1.msra.mxu0 0.0
  %818 = vmatprep.subr.mxu0 0.0
  %819 = vmatpush1.msra.mxu0 0.0
  %820 = vmatprep.subr.mxu0 0.0
  %821 = vmatpush1.msra.mxu0 0.0
  %822 = vmatprep.subr.mxu0 0.0
  %823 = vmatpush1.msra.mxu0 0.0
  %824 = vmatprep.subr.mxu0 0.0
  %825 = vmatpush1.msra.mxu0 0.0
  %826 = vmatprep.subr.mxu0 0.0
  %827 = vmatpush1.msra.mxu0 0.0
  %828 = vmatprep.subr.mxu0 0.0
  %829 = vmatpush1.msra.mxu0 0.0
  %830 = vmatprep.subr.mxu0 0.0
  %831 = vmatpush1.msra.mxu0 0.0
  %832 = vmatprep.subr.mxu0 0.0
  %833 = vmatpush1.msra.mxu0 0.0
  %834 = vmatprep.subr.mxu0 0.0
  %835 = vmatpush1.msra.mxu0 0.0
  %836 = vmatprep.subr.mxu0 0.0
  %837 = vmatpush1.msra.mxu0 0.0
  %838 = vmatprep.subr.mxu0 0.0
  %839 = vmatpush1.msra.mxu0 0.0
  %840 = vmatprep.subr.mxu0 0.0
  %841 = vmatpush1.msra.mxu0 0.0
  %842 = vmatprep.subr.mxu0 0.0
  %843 = vmatpush1.msra.mxu0 0.0
  %844 = vmatprep.subr.mxu0 0.0
  %845 = vmatpush1.msra.mxu0 0.0
  %846 = vmatprep.subr.mxu0 0.0
  %847 = vmatpush1.msra.mxu0 0.0
  %848 = vmatprep.subr.mxu0 0.0
  %849 = vmatpush1.msra.mxu0 0.0
  %850 = vmatprep.subr.mxu0 0.0
  %851 = vmatpush1.msra.mxu0 0.0
  %852 = vmatprep.subr.mxu0 0.0
  %853 = vmatpush1.msra.mxu0 0.0
  %854 = vmatprep.subr.mxu0 0.0
  %855 = vmatpush1.msra.mxu0 0.0
  %856 = vmatprep.mubr.f32.mxu0 0.0
  %857 = vmatmul.mubr.f32.gmra.mrb[0].mxu0 %v790
  %v858 = vpop.f32.mrb[0].mxu0
  %v859 = vadd.f32 0.0, %v858
  %v860 = vpop.f32.mrb[0].mxu0
  %861 = vdwg.mxu0
  %v862 = vadd.f32 %v176, %v859
  %v863 = vxor.u32 %v862, 2147483648
  %v864 = vmul.f32 %v863, 1.442695
  %v865 = vpow.pop %v864
  %v866 = vadd.f32 %v865, 1.0
  %v867 = vrcp.pop %v866
  %v868 = vmul.f32 1.0, %v867
  %v869 = vtanh.pop %v862
  %v870 = vmul.f32 %v868, %v780
  %872 = vrot.lane.b32.xlu0 %v869, 64
  %v873 = vpop.permute.xlu0 %872
  %v875 = vmul.f32 %v868, %v873
  %877 = vrot.lane.b32.xlu0 %v875, 32
  %v878 = vpop.permute.xlu0 %877
  %v880 = vadd.f32 %v870, %v878
  %v881 = vtanh.pop %v880
  %883 = vrot.lane.b32.xlu0 %v881, 64
  %v884 = vpop.permute.xlu0 %883
  %v886 = vmul.f32 %v868, %v884
  %888 = vrot.lane.b32.xlu0 %v886, 32
  %v889 = vpop.permute.xlu0 %888
  %v890 = vsel %vm188, %v889, 0
  %892 = vmatprep.subr.mxu0 0.0
  %893 = vmatpush1.msra.mxu0 %v184
  %894 = vmatprep.subr.mxu0 0.0
  %895 = vmatpush1.msra.mxu0 %v185
  %896 = vmatprep.subr.mxu0 0.0
  %897 = vmatpush1.msra.mxu0 %v186
  %898 = vmatprep.subr.mxu0 0.0
  %899 = vmatpush1.msra.mxu0 %v187
  %900 = vmatprep.subr.mxu0 0.0
  %901 = vmatpush1.msra.mxu0 0.0
  %902 = vmatprep.subr.mxu0 0.0
  %903 = vmatpush1.msra.mxu0 0.0
  %904 = vmatprep.subr.mxu0 0.0
  %905 = vmatpush1.msra.mxu0 0.0
  %906 = vmatprep.subr.mxu0 0.0
  %907 = vmatpush1.msra.mxu0 0.0
  %908 = vmatprep.subr.mxu0 0.0
  %909 = vmatpush1.msra.mxu0 0.0
  %910 = vmatprep.subr.mxu0 0.0
  %911 = vmatpush1.msra.mxu0 0.0
  %912 = vmatprep.subr.mxu0 0.0
  %913 = vmatpush1.msra.mxu0 0.0
  %914 = vmatprep.subr.mxu0 0.0
  %915 = vmatpush1.msra.mxu0 0.0
  %916 = vmatprep.subr.mxu0 0.0
  %917 = vmatpush1.msra.mxu0 0.0
  %918 = vmatprep.subr.mxu0 0.0
  %919 = vmatpush1.msra.mxu0 0.0
  %920 = vmatprep.subr.mxu0 0.0
  %921 = vmatpush1.msra.mxu0 0.0
  %922 = vmatprep.subr.mxu0 0.0
  %923 = vmatpush1.msra.mxu0 0.0
  %924 = vmatprep.subr.mxu0 0.0
  %925 = vmatpush1.msra.mxu0 0.0
  %926 = vmatprep.subr.mxu0 0.0
  %927 = vmatpush1.msra.mxu0 0.0
  %928 = vmatprep.subr.mxu0 0.0
  %929 = vmatpush1.msra.mxu0 0.0
  %930 = vmatprep.subr.mxu0 0.0
  %931 = vmatpush1.msra.mxu0 0.0
  %932 = vmatprep.subr.mxu0 0.0
  %933 = vmatpush1.msra.mxu0 0.0
  %934 = vmatprep.subr.mxu0 0.0
  %935 = vmatpush1.msra.mxu0 0.0
  %936 = vmatprep.subr.mxu0 0.0
  %937 = vmatpush1.msra.mxu0 0.0
  %938 = vmatprep.subr.mxu0 0.0
  %939 = vmatpush1.msra.mxu0 0.0
  %940 = vmatprep.subr.mxu0 0.0
  %941 = vmatpush1.msra.mxu0 0.0
  %942 = vmatprep.subr.mxu0 0.0
  %943 = vmatpush1.msra.mxu0 0.0
  %944 = vmatprep.subr.mxu0 0.0
  %945 = vmatpush1.msra.mxu0 0.0
  %946 = vmatprep.subr.mxu0 0.0
  %947 = vmatpush1.msra.mxu0 0.0
  %948 = vmatprep.subr.mxu0 0.0
  %949 = vmatpush1.msra.mxu0 0.0
  %950 = vmatprep.subr.mxu0 0.0
  %951 = vmatpush1.msra.mxu0 0.0
  %952 = vmatprep.subr.mxu0 0.0
  %953 = vmatpush1.msra.mxu0 0.0
  %954 = vmatprep.subr.mxu0 0.0
  %955 = vmatpush1.msra.mxu0 0.0
  %956 = vmatprep.mubr.f32.mxu0 0.0
  %957 = vmatmul.mubr.f32.gmra.mrb[0].mxu0 %v890
  %v958 = vpop.f32.mrb[0].mxu0
  %v959 = vadd.f32 0.0, %v958
  %v960 = vpop.f32.mrb[0].mxu0
  %961 = vdwg.mxu0
  %v962 = vadd.f32 %v181, %v959
  %v963 = vxor.u32 %v962, 2147483648
  %v964 = vmul.f32 %v963, 1.442695
  %v965 = vpow.pop %v964
  %v966 = vadd.f32 %v965, 1.0
  %v967 = vrcp.pop %v966
  %v968 = vmul.f32 1.0, %v967
  %v969 = vtanh.pop %v962
  %v970 = vmul.f32 %v968, %v880
  %972 = vrot.lane.b32.xlu0 %v969, 64
  %v973 = vpop.permute.xlu0 %972
  %v975 = vmul.f32 %v968, %v973
  %977 = vrot.lane.b32.xlu0 %v975, 32
  %v978 = vpop.permute.xlu0 %977
  %v980 = vadd.f32 %v970, %v978
  %v981 = vtanh.pop %v980
  %983 = vrot.lane.b32.xlu0 %v981, 64
  %v984 = vpop.permute.xlu0 %983
  %v986 = vmul.f32 %v968, %v984
  %v987 = vld [vmem:[%s4] sm:$0xff]
  %v988 = vld [vmem:[%s4 + $0x8] sm:$0xff]
  %v989 = vld [vmem:[%s4 + $0x10] sm:$0xff]
  %v990 = vld [vmem:[%s4 + $0x18] sm:$0xff]
  %v991 = vld [vmem:[%s5] sm:$0x1]
  %v993 = vlaneseq
  %v994 = vshrl.u32 %v993, 7
  %v995 = vsub.s32 0, %v994
  %v996 = vrot.slane %v991, %v995
  %999 = vrot.lane.b32.xlu0 %v986, 32
  %v1000 = vpop.permute.xlu0 %999
  %v1001 = vsel %vm188, %v1000, 0
  %1003 = vmatprep.subr.mxu0 0.0
  %1004 = vmatpush1.msra.mxu0 %v987
  %1005 = vmatprep.subr.mxu0 0.0
  %1006 = vmatpush1.msra.mxu0 %v988
  %1007 = vmatprep.subr.mxu0 0.0
  %1008 = vmatpush1.msra.mxu0 %v989
  %1009 = vmatprep.subr.mxu0 0.0
  %1010 = vmatpush1.msra.mxu0 %v990
  %1011 = vmatprep.subr.mxu0 0.0
  %1012 = vmatpush1.msra.mxu0 0.0
  %1013 = vmatprep.subr.mxu0 0.0
  %1014 = vmatpush1.msra.mxu0 0.0
  %1015 = vmatprep.subr.mxu0 0.0
  %1016 = vmatpush1.msra.mxu0 0.0
  %1017 = vmatprep.subr.mxu0 0.0
  %1018 = vmatpush1.msra.mxu0 0.0
  %1019 = vmatprep.subr.mxu0 0.0
  %1020 = vmatpush1.msra.mxu0 0.0
  %1021 = vmatprep.subr.mxu0 0.0
  %1022 = vmatpush1.msra.mxu0 0.0
  %1023 = vmatprep.subr.mxu0 0.0
  %1024 = vmatpush1.msra.mxu0 0.0
  %1025 = vmatprep.subr.mxu0 0.0
  %1026 = vmatpush1.msra.mxu0 0.0
  %1027 = vmatprep.subr.mxu0 0.0
  %1028 = vmatpush1.msra.mxu0 0.0
  %1029 = vmatprep.subr.mxu0 0.0
  %1030 = vmatpush1.msra.mxu0 0.0
  %1031 = vmatprep.subr.mxu0 0.0
  %1032 = vmatpush1.msra.mxu0 0.0
  %1033 = vmatprep.subr.mxu0 0.0
  %1034 = vmatpush1.msra.mxu0 0.0
  %1035 = vmatprep.subr.mxu0 0.0
  %1036 = vmatpush1.msra.mxu0 0.0
  %1037 = vmatprep.subr.mxu0 0.0
  %1038 = vmatpush1.msra.mxu0 0.0
  %1039 = vmatprep.subr.mxu0 0.0
  %1040 = vmatpush1.msra.mxu0 0.0
  %1041 = vmatprep.subr.mxu0 0.0
  %1042 = vmatpush1.msra.mxu0 0.0
  %1043 = vmatprep.subr.mxu0 0.0
  %1044 = vmatpush1.msra.mxu0 0.0
  %1045 = vmatprep.subr.mxu0 0.0
  %1046 = vmatpush1.msra.mxu0 0.0
  %1047 = vmatprep.subr.mxu0 0.0
  %1048 = vmatpush1.msra.mxu0 0.0
  %1049 = vmatprep.subr.mxu0 0.0
  %1050 = vmatpush1.msra.mxu0 0.0
  %1051 = vmatprep.subr.mxu0 0.0
  %1052 = vmatpush1.msra.mxu0 0.0
  %1053 = vmatprep.subr.mxu0 0.0
  %1054 = vmatpush1.msra.mxu0 0.0
  %1055 = vmatprep.subr.mxu0 0.0
  %1056 = vmatpush1.msra.mxu0 0.0
  %1057 = vmatprep.subr.mxu0 0.0
  %1058 = vmatpush1.msra.mxu0 0.0
  %1059 = vmatprep.subr.mxu0 0.0
  %1060 = vmatpush1.msra.mxu0 0.0
  %1061 = vmatprep.subr.mxu0 0.0
  %1062 = vmatpush1.msra.mxu0 0.0
  %1063 = vmatprep.subr.mxu0 0.0
  %1064 = vmatpush1.msra.mxu0 0.0
  %1065 = vmatprep.subr.mxu0 0.0
  %1066 = vmatpush1.msra.mxu0 0.0
  %1067 = vmatprep.mubr.f32.mxu0 0.0
  %1068 = vmatmul.mubr.f32.gmra.mrb[0].mxu0 %v1001
  %v1069 = vpop.f32.mrb[0].mxu0
  %v1070 = vadd.f32 %v996, %v1069
  %v1071 = vpop.f32.mrb[0].mxu0
  %1072 = vdwg.mxu0
  %v1073 = vmax.f32 %v1070, 0.0
  %v1074 = vld [vmem:[%s6] sm:$0xff]
  %v1075 = vld [vmem:[%s6 + $0x8] sm:$0xff]
  %v1076 = vld [vmem:[%s6 + $0x10] sm:$0xff]
  %v1077 = vld [vmem:[%s6 + $0x18] sm:$0xff]
  %v1078 = vld [vmem:[%s7] sm:$0x1]
  %v1080 = vlaneseq
  %v1081 = vshrl.u32 %v1080, 7
  %v1082 = vsub.s32 0, %v1081
  %v1083 = vrot.slane %v1078, %v1082
  %v1086 = vsel %vm188, %v1073, 0
  %1088 = vmatprep.subr.mxu0 0.0
  %1089 = vmatpush1.msra.mxu0 %v1074
  %1090 = vmatprep.subr.mxu0 0.0
  %1091 = vmatpush1.msra.mxu0 %v1075
  %1092 = vmatprep.subr.mxu0 0.0
  %1093 = vmatpush1.msra.mxu0 %v1076
  %1094 = vmatprep.subr.mxu0 0.0
  %1095 = vmatpush1.msra.mxu0 %v1077
  %1096 = vmatprep.subr.mxu0 0.0
  %1097 = vmatpush1.msra.mxu0 0.0
  %1098 = vmatprep.subr.mxu0 0.0
  %1099 = vmatpush1.msra.mxu0 0.0
  %1100 = vmatprep.subr.mxu0 0.0
  %1101 = vmatpush1.msra.mxu0 0.0
  %1102 = vmatprep.subr.mxu0 0.0
  %1103 = vmatpush1.msra.mxu0 0.0
  %1104 = vmatprep.subr.mxu0 0.0
  %1105 = vmatpush1.msra.mxu0 0.0
  %1106 = vmatprep.subr.mxu0 0.0
  %1107 = vmatpush1.msra.mxu0 0.0
  %1108 = vmatprep.subr.mxu0 0.0
  %1109 = vmatpush1.msra.mxu0 0.0
  %1110 = vmatprep.subr.mxu0 0.0
  %1111 = vmatpush1.msra.mxu0 0.0
  %1112 = vmatprep.subr.mxu0 0.0
  %1113 = vmatpush1.msra.mxu0 0.0
  %1114 = vmatprep.subr.mxu0 0.0
  %1115 = vmatpush1.msra.mxu0 0.0
  %1116 = vmatprep.subr.mxu0 0.0
  %1117 = vmatpush1.msra.mxu0 0.0
  %1118 = vmatprep.subr.mxu0 0.0
  %1119 = vmatpush1.msra.mxu0 0.0
  %1120 = vmatprep.subr.mxu0 0.0
  %1121 = vmatpush1.msra.mxu0 0.0
  %1122 = vmatprep.subr.mxu0 0.0
  %1123 = vmatpush1.msra.mxu0 0.0
  %1124 = vmatprep.subr.mxu0 0.0
  %1125 = vmatpush1.msra.mxu0 0.0
  %1126 = vmatprep.subr.mxu0 0.0
  %1127 = vmatpush1.msra.mxu0 0.0
  %1128 = vmatprep.subr.mxu0 0.0
  %1129 = vmatpush1.msra.mxu0 0.0
  %1130 = vmatprep.subr.mxu0 0.0
  %1131 = vmatpush1.msra.mxu0 0.0
  %1132 = vmatprep.subr.mxu0 0.0
  %1133 = vmatpush1.msra.mxu0 0.0
  %1134 = vmatprep.subr.mxu0 0.0
  %1135 = vmatpush1.msra.mxu0 0.0
  %1136 = vmatprep.subr.mxu0 0.0
  %1137 = vmatpush1.msra.mxu0 0.0
  %1138 = vmatprep.subr.mxu0 0.0
  %1139 = vmatpush1.msra.mxu0 0.0
  %1140 = vmatprep.subr.mxu0 0.0
  %1141 = vmatpush1.msra.mxu0 0.0
  %1142 = vmatprep.subr.mxu0 0.0
  %1143 = vmatpush1.msra.mxu0 0.0
  %1144 = vmatprep.subr.mxu0 0.0
  %1145 = vmatpush1.msra.mxu0 0.0
  %1146 = vmatprep.subr.mxu0 0.0
  %1147 = vmatpush1.msra.mxu0 0.0
  %1148 = vmatprep.subr.mxu0 0.0
  %1149 = vmatpush1.msra.mxu0 0.0
  %1150 = vmatprep.subr.mxu0 0.0
  %1151 = vmatpush1.msra.mxu0 0.0
  %1152 = vmatprep.mubr.f32.mxu0 0.0
  %1153 = vmatmul.mubr.f32.gmra.mrb[0].mxu0 %v1086
  %v1154 = vpop.f32.mrb[0].mxu0
  %v1155 = vadd.f32 %v1083, %v1154
  %v1156 = vpop.f32.mrb[0].mxu0
  %1157 = vdwg.mxu0
  %v1158 = vmax.f32 %v1155, 0.0
  %v1159 = vld [vmem:[%s8] sm:$0xff]
  %v1160 = vld [vmem:[%s8 + $0x8] sm:$0xff]
  %v1161 = vld [vmem:[%s8 + $0x10] sm:$0xff]
  %v1162 = vld [vmem:[%s8 + $0x18] sm:$0xff]
  %v1163 = vld [vmem:[#allocation2] sm:$0x1]
  %v1165 = vlaneseq
  %v1166 = vshrl.u32 %v1165, 7
  %v1167 = vsub.s32 0, %v1166
  %v1168 = vrot.slane %v1163, %v1167
  %v1171 = vsel %vm188, %v1158, 0
  %1173 = vmatprep.subr.mxu0 0.0
  %1174 = vmatpush1.msra.mxu0 %v1159
  %1175 = vmatprep.subr.mxu0 0.0
  %1176 = vmatpush1.msra.mxu0 %v1160
  %1177 = vmatprep.subr.mxu0 0.0
  %1178 = vmatpush1.msra.mxu0 %v1161
  %1179 = vmatprep.subr.mxu0 0.0
  %1180 = vmatpush1.msra.mxu0 %v1162
  %1181 = vmatprep.subr.mxu0 0.0
  %1182 = vmatpush1.msra.mxu0 0.0
  %1183 = vmatprep.subr.mxu0 0.0
  %1184 = vmatpush1.msra.mxu0 0.0
  %1185 = vmatprep.subr.mxu0 0.0
  %1186 = vmatpush1.msra.mxu0 0.0
  %1187 = vmatprep.subr.mxu0 0.0
  %1188 = vmatpush1.msra.mxu0 0.0
  %1189 = vmatprep.subr.mxu0 0.0
  %1190 = vmatpush1.msra.mxu0 0.0
  %1191 = vmatprep.subr.mxu0 0.0
  %1192 = vmatpush1.msra.mxu0 0.0
  %1193 = vmatprep.subr.mxu0 0.0
  %1194 = vmatpush1.msra.mxu0 0.0
  %1195 = vmatprep.subr.mxu0 0.0
  %1196 = vmatpush1.msra.mxu0 0.0
  %1197 = vmatprep.subr.mxu0 0.0
  %1198 = vmatpush1.msra.mxu0 0.0
  %1199 = vmatprep.subr.mxu0 0.0
  %1200 = vmatpush1.msra.mxu0 0.0
  %1201 = vmatprep.subr.mxu0 0.0
  %1202 = vmatpush1.msra.mxu0 0.0
  %1203 = vmatprep.subr.mxu0 0.0
  %1204 = vmatpush1.msra.mxu0 0.0
  %1205 = vmatprep.subr.mxu0 0.0
  %1206 = vmatpush1.msra.mxu0 0.0
  %1207 = vmatprep.subr.mxu0 0.0
  %1208 = vmatpush1.msra.mxu0 0.0
  %1209 = vmatprep.subr.mxu0 0.0
  %1210 = vmatpush1.msra.mxu0 0.0
  %1211 = vmatprep.subr.mxu0 0.0
  %1212 = vmatpush1.msra.mxu0 0.0
  %1213 = vmatprep.subr.mxu0 0.0
  %1214 = vmatpush1.msra.mxu0 0.0
  %1215 = vmatprep.subr.mxu0 0.0
  %1216 = vmatpush1.msra.mxu0 0.0
  %1217 = vmatprep.subr.mxu0 0.0
  %1218 = vmatpush1.msra.mxu0 0.0
  %1219 = vmatprep.subr.mxu0 0.0
  %1220 = vmatpush1.msra.mxu0 0.0
  %1221 = vmatprep.subr.mxu0 0.0
  %1222 = vmatpush1.msra.mxu0 0.0
  %1223 = vmatprep.subr.mxu0 0.0
  %1224 = vmatpush1.msra.mxu0 0.0
  %1225 = vmatprep.subr.mxu0 0.0
  %1226 = vmatpush1.msra.mxu0 0.0
  %1227 = vmatprep.subr.mxu0 0.0
  %1228 = vmatpush1.msra.mxu0 0.0
  %1229 = vmatprep.subr.mxu0 0.0
  %1230 = vmatpush1.msra.mxu0 0.0
  %1231 = vmatprep.subr.mxu0 0.0
  %1232 = vmatpush1.msra.mxu0 0.0
  %1233 = vmatprep.subr.mxu0 0.0
  %1234 = vmatpush1.msra.mxu0 0.0
  %1235 = vmatprep.subr.mxu0 0.0
  %1236 = vmatpush1.msra.mxu0 0.0
  %1237 = vmatprep.mubr.f32.mxu0 0.0
  %1238 = vmatmul.mubr.f32.gmra.mrb[0].mxu0 %v1171
  %v1239 = vpop.f32.mrb[0].mxu0
  %v1240 = vadd.f32 %v1168, %v1239
  %v1241 = vpop.f32.mrb[0].mxu0
  %1242 = vdwg.mxu0
  %vm1243 = vcmask 7168
  %1244 = vst.msk [vmem:[%s10] sm:$0xff] %vm1243, %v1240
  // Predicated region
  $region42: #{lstm_model_forward.1} parent=0 // pred_check
    _
  $region43: #{lstm_model_forward.1} parent=0 // pred_check_branch
    %1246 = sbr.rel (0) target = $region45
  $region44: #{lstm_model_forward.1} parent=0 // pred_region
    _
  $region45: #{lstm_model_forward.1} parent=0 // pred_fallthru
    _
  // Predicated region
  $region46: #{lstm_model_forward.1} parent=0 // pred_check
    _
  $region47: #{lstm_model_forward.1} parent=0 // pred_check_branch
    %1248 = sbr.rel (0) target = $region49
  $region48: #{lstm_model_forward.1} parent=0 // pred_region
    _
  $region49: #{lstm_model_forward.1} parent=0 // pred_fallthru
    _

</llo_original>
